<compile_context>
chip_gen: v7x
topology: tpu7x:2x2x1
jax: 0.10.0
libtpu: 0.0.40
codegen_flags: <defaults>
</compile_context>

<pallas_src>
import math

import numpy as np
import jax
import jax.numpy as jnp
from jax.experimental import pallas as pl
from jax.experimental.pallas import tpu as pltpu

SELU_ALPHA = 1.6732632423543772
SELU_SCALE = 1.0507009873554805
BN_EPS = 1e-5
SUBLANES = 8               # f32 sublane granule; batch is padded to a multiple of this
LANES = 128                # lane granule; kernel output lanes are padded to a multiple of this
DOT_DT = jnp.bfloat16      # MXU operand dtype for the deconv matmuls (f32 accumulation)

# Whole (tiny) arrays live in VMEM; no grid needed at these sizes.
_VMEM = pl.BlockSpec(memory_space=pltpu.MemorySpace.VMEM)


# ----------------------------------------------------------------------- in-kernel helpers

def _selu(x):
    return SELU_SCALE * jnp.where(x > 0, x, SELU_ALPHA * (jnp.exp(x) - 1.0))


def _bn_selu(t, gamma, beta, gred, gbcast, n_real):
    """Train-mode BatchNorm2d + SELU on a (rows, L) tile; channel index = lane % C.

    gred  : (L, C) 0/1 matrix -> per-channel sums over all lane groups.
    gbcast: (C, L) 0/1 matrix -> per-channel coefficients broadcast back to every lane group.
    Rows/lanes that are layout padding hold zeros on input, so the sums only see real data;
    n_real = real batch x real spatial positions.
    """
    s1 = jnp.sum(t, axis=0, keepdims=True)
    s2 = jnp.sum(t * t, axis=0, keepdims=True)
    stats = jnp.dot(jnp.concatenate([s1, s2], axis=0), gred,
                    preferred_element_type=jnp.float32)             # (2, C)
    mean = stats[0:1, :] * (1.0 / n_real)
    var = stats[1:2, :] * (1.0 / n_real) - mean * mean               # one-pass biased var
    inv = jax.lax.rsqrt(var + BN_EPS)
    scale = gamma * inv                                              # (1, C)
    shift = beta - mean * scale                                      # (1, C)
    coefs = jnp.dot(jnp.concatenate([scale, shift], axis=0), gbcast,
                    preferred_element_type=jnp.float32)              # (2, L)
    return _selu(t * coefs[0:1, :] + coefs[1:2, :])


def _deconv_s2(pad_ref, w3_ref, bp, s):
    """ConvTranspose2d(k=4, s=2, p=1) on a VMEM-resident zero-padded input.

    pad_ref: ((s+2)*bp, (s+2)*cin) rows (h_pad, b), lanes (w_pad, cin), 1-px zero border.
    w3_ref : (3, (s+2)*cin, N) per-row-shift matrices with the 3 lane shifts folded into K
             and the destination lane layout baked into N.
    returns: (s*bp, N) f32, rows (i, b).
    """
    padb = pad_ref[...].astype(DOT_DT)            # one cast per deconv (VALU has slack)
    acc = None
    for sh in range(3):                           # 8-row-aligned, full-lane-width views
        part = jnp.dot(padb[sh * bp:(sh + s) * bp, :], w3_ref[sh],
                       preferred_element_type=jnp.float32)
        acc = part if acc is None else acc + part
    return acc


def _make_fused_kernel(batch, bp, chans):
    n_blocks = len(chans)

    def kernel(*refs):
        z_ref, w0_ref, g0_ref, b0_ref, gr0_ref, gb0_ref, m0_ref = refs[0:7]
        idx = 7
        mids = []
        for _ in range(n_blocks - 1):
            mids.append(refs[idx:idx + 6])
            idx += 6
        wf_ref = refs[idx]
        out_ref = refs[idx + 1]
        pads = refs[idx + 2:]

        # ---- block 0: ConvT(k4, s1, p0) on the 1x1 latent == one matmul; + BN + SELU.
        c0 = chans[0]
        glanes0 = 6 * c0                           # (4+2) padded kw positions per kh group
        t = jnp.dot(z_ref[...].astype(DOT_DT), w0_ref[...],
                    preferred_element_type=jnp.float32)              # (bp, 4*glanes0)
        t = _bn_selu(t, g0_ref[...], b0_ref[...], gr0_ref[...], gb0_ref[...],
                     float(16 * batch)) * m0_ref[...]
        pad0 = pads[0]
        zrow0 = jnp.zeros((bp, glanes0), jnp.float32)
        pad0[0:bp, :] = zrow0                                         # top border rows
        pad0[5 * bp:6 * bp, :] = zrow0                                # bottom border rows
        for kh in range(4):           # interior: 8-row-aligned, lane-0, full-width stores
            pad0[(kh + 1) * bp:(kh + 2) * bp, :] = \
                t[:, kh * glanes0:(kh + 1) * glanes0]

        # ---- middle blocks: ConvT(k4, s2, p1) + BN + SELU, all VMEM-resident.
        s = 4
        for li, (w3_ref, g_ref, b_ref, gr_ref, gb_ref, m_ref) in enumerate(mids):
            cout = chans[li + 1]
            y = _deconv_s2(pads[li], w3_ref, bp, s)                   # (s*bp, 2*(2s+2)*cout)
            y = _bn_selu(y, g_ref[...], b_ref[...], gr_ref[...], gb_ref[...],
                         float(4 * s * s * batch)) * m_ref[...]
            nxt = pads[li + 1]
            nlanes = (2 * s + 2) * cout
            zrow = jnp.zeros((bp, nlanes), jnp.float32)
            nxt[0:bp, :] = zrow                                       # top border rows
            nxt[(2 * s + 1) * bp:(2 * s + 2) * bp, :] = zrow          # bottom border rows
            for i in range(s):
                for ry in range(2):
                    oh = 2 * i + ry
                    nxt[(oh + 1) * bp:(oh + 2) * bp, :] = \
                        y[i * bp:(i + 1) * bp, ry * nlanes:(ry + 1) * nlanes]
            s *= 2

        # ---- final block: ConvT(k4, s2, p1) + tanh; one lane-dense aligned store.
        y = jnp.tanh(_deconv_s2(pads[-1], wf_ref, bp, s))             # (s*bp, out_lanes)
        out_ref[...] = y

    return kernel


# ----------------------------------------------------------------------- host-side param prep

def _build_deconv_w0(w):
    """Block-0 ConvT(k4, s1, p0) on a 1x1 input with the +1 kw left border baked in.

    w: (Cin, C0, 4, 4).  Returns (Cin, 4*6*C0): output lanes (kh, kw_pad in [0,6), c0),
    kw_pad = kw + 1; border columns are zero.
    """
    cin, c0 = w.shape[0], w.shape[1]
    m = np.zeros((cin, 4, 6, c0), dtype=np.float32)
    for kh in range(4):
        for kw in range(4):
            m[:, kh, kw + 1, :] = w[:, :, kh, kw]
    return m.reshape(cin, 4 * 6 * c0)


def _build_deconv_s2_w(w, s, pad_border, lane_round=1):
    """Fold ConvTranspose2d(k4, s2, p1) into 3 per-row-shift matrices.

    The 3 lane (sw) shifts are folded into K (K spans the FULL padded lane extent (s+2)*Cin)
    and the destination lane layout is baked into N:
      pad_border=True : output lanes (ry, ow_pad in [0, 2s+2), cout), ow_pad = ow + 1
                        (matches the next zero-padded scratch -> stores start at lane 0)
      pad_border=False: output lanes (ry, ow in [0, 2s), cout), N rounded up to lane_round.
    w: (Cin, Cout, 4, 4).  Returns (3, (s+2)*Cin, N).
    """
    cin, cout = w.shape[0], w.shape[1]
    wout = 2 * s
    wl = wout + 2 if pad_border else wout
    off = 1 if pad_border else 0
    ncols = 2 * wl * cout
    ncols = ((ncols + lane_round - 1) // lane_round) * lane_round
    m = np.zeros((3, (s + 2) * cin, ncols), dtype=np.float32)
    for ry in range(2):
        for rx in range(2):
            for a in range(2):
                for b in range(2):
                    tap = w[:, :, 3 - 2 * a - ry, 3 - 2 * b - rx]     # (Cin, Cout)
                    sh, sw = ry + a, rx + b
                    for j in range(s):
                        r0 = (sw + j) * cin
                        c0 = (ry * wl + 2 * j + rx + off) * cout
                        m[sh, r0:r0 + cin, c0:c0 + cout] += tap
    return m


def _mask_block0(batch, bp, c0):
    """Zero padded-batch rows and border kw lanes of the block-0 activation tile."""
    m = np.zeros((bp, 4, 6, c0), dtype=np.float32)
    m[:batch, :, 1:5, :] = 1.0
    return m.reshape(bp, 4 * 6 * c0)


def _mask_mid(batch, bp, s, cout):
    """Zero padded-batch rows and border ow lanes of a middle-block deconv output tile."""
    m = np.zeros((s, bp, 2, 2 * s + 2, cout), dtype=np.float32)
    m[:, :batch, :, 1:2 * s + 1, :] = 1.0
    return m.reshape(s * bp, 2 * (2 * s + 2) * cout)


def prepare_params(params, batch):
    """One-time host-side weight/mask reorganization (hoisted out of the forward path)."""
    bp = max(SUBLANES, ((batch + SUBLANES - 1) // SUBLANES) * SUBLANES)
    blocks = params["blocks"]
    w0 = np.asarray(blocks[0]["w"], np.float32)                       # (Cin0, C0, 4, 4)
    c0 = w0.shape[1]
    eye0 = np.eye(c0, dtype=np.float32)
    prep = {
        "w0": jnp.asarray(_build_deconv_w0(w0), DOT_DT),
        "g0": jnp.asarray(np.asarray(blocks[0]["gamma"], np.float32)[None, :]),
        "b0": jnp.asarray(np.asarray(blocks[0]["beta"], np.float32)[None, :]),
        "gred0": jnp.asarray(np.tile(eye0, (4 * 6, 1))),              # (L0, C0)
        "gbc0": jnp.asarray(np.tile(eye0, (1, 4 * 6))),               # (C0, L0)
        "mask0": jnp.asarray(_mask_block0(batch, bp, c0)),
        "mids": [],
    }
    s = 4
    for blk in blocks[1:]:
        w = np.asarray(blk["w"], np.float32)
        cout = w.shape[1]
        groups = 2 * (2 * s + 2)
        eye = np.eye(cout, dtype=np.float32)
        prep["mids"].append((
            jnp.asarray(_build_deconv_s2_w(w, s, pad_border=True), DOT_DT),
            jnp.asarray(np.asarray(blk["gamma"], np.float32)[None, :]),
            jnp.asarray(np.asarray(blk["beta"], np.float32)[None, :]),
            jnp.asarray(np.tile(eye, (groups, 1))),                   # (L, C)
            jnp.asarray(np.tile(eye, (1, groups))),                   # (C, L)
            jnp.asarray(_mask_mid(batch, bp, s, cout)),
        ))
        s *= 2
    prep["wf"] = jnp.asarray(
        _build_deconv_s2_w(np.asarray(params["w_final"], np.float32), s,
                           pad_border=False, lane_round=LANES), DOT_DT)
    return prep


# ----------------------------------------------------------------------- forward

def cnn_neural_rasterizer_forward(x, prep, *, output_dim):
    """x: (B, input_dim, 1, 1)  ->  (B, output_dim, output_size, output_size)."""
    batch = x.shape[0]
    bp = max(SUBLANES, ((batch + SUBLANES - 1) // SUBLANES) * SUBLANES)
    z = x.reshape(batch, -1)
    z = jnp.pad(z, ((0, bp - batch), (0, 0)))        # zero rows for padded batch slots

    # Static configuration derived from (pre-prepared) parameter shapes.
    c0 = prep["g0"].shape[1]
    chans = [c0] + [mid[1].shape[1] for mid in prep["mids"]]
    s_final = 4 * (2 ** (len(chans) - 1))
    out_size = 2 * s_final
    out_lanes = prep["wf"].shape[2]

    kernel = _make_fused_kernel(batch, bp, chans)

    # One zero-padded VMEM scratch per stride-2 deconv input (interior + 1-px border).
    scratch = []
    sk = 4
    for ck in chans:
        scratch.append(pltpu.VMEM(((sk + 2) * bp, (sk + 2) * ck), jnp.float32))
        sk *= 2

    args = [z, prep["w0"], prep["g0"], prep["b0"], prep["gred0"], prep["gbc0"],
            prep["mask0"]]
    for mid in prep["mids"]:
        args.extend(mid)
    args.append(prep["wf"])

    out2d = pl.pallas_call(
        kernel,
        out_shape=jax.ShapeDtypeStruct((s_final * bp, out_lanes), jnp.float32),
        in_specs=[_VMEM] * len(args),
        out_specs=_VMEM,
        scratch_shapes=scratch,
    )(*args)

    # rows (i, b_pad), lanes (ry, ow, c) with oh = 2*i + ry; tiny XLA slice/transpose outside.
    y = out2d[:, :2 * out_size * output_dim]
    y = y.reshape(s_final, bp, 2, out_size, output_dim)[:, :batch]
    y = jnp.transpose(y, (1, 4, 0, 2, 3))            # (b, c, i, ry, ow)
    return y.reshape(batch, output_dim, out_size, out_size)


# ----------------------------------------------------------------------- synthetic parameters

def init_params(key, input_dim, output_dim, hidden_dim, output_size):
    """Deterministic synthetic parameters matching the PyTorch module's shapes."""
    number_layers = int(math.log2(output_size)) - 2
    blocks = []
    in_c = input_dim
    for i in reversed(range(number_layers)):
        out_c = hidden_dim * (2 ** i)
        key, kw, kg, kb = jax.random.split(key, 4)
        blocks.append(dict(
            w=0.05 * jax.random.normal(kw, (in_c, out_c, 4, 4), jnp.float32),
            gamma=1.0 + 0.1 * jax.random.normal(kg, (out_c,), jnp.float32),
            beta=0.1 * jax.random.normal(kb, (out_c,), jnp.float32),
        ))
        in_c = out_c
    key, kw = jax.random.split(key)
    w_final = 0.05 * jax.random.normal(kw, (in_c, output_dim, 4, 4), jnp.float32)
    return {"blocks": blocks, "w_final": w_final}


# ----------------------------------------------------------------------- numpy reference

def _ref_convtranspose(x, w, stride, padding):
    B, Cin, H, W = x.shape
    Cout, K = w.shape[1], w.shape[2]
    Hout = (H - 1) * stride - 2 * padding + K
    Wout = (W - 1) * stride - 2 * padding + K
    y = np.zeros((B, Cout, Hout, Wout), dtype=np.float64)
    for ih in range(H):
        for iw in range(W):
            for kh in range(K):
                for kw in range(K):
                    oh = ih * stride - padding + kh
                    ow = iw * stride - padding + kw
                    if 0 <= oh < Hout and 0 <= ow < Wout:
                        y[:, :, oh, ow] += x[:, :, ih, iw] @ w[:, :, kh, kw]
    return y


def _ref_bn_selu(x, gamma, beta):
    mean = x.mean(axis=(0, 2, 3), keepdims=True)
    var = x.var(axis=(0, 2, 3), keepdims=True)   # biased, train-mode BN
    xhat = (x - mean) / np.sqrt(var + BN_EPS)
    y = gamma[None, :, None, None] * xhat + beta[None, :, None, None]
    return SELU_SCALE * np.where(y > 0, y, SELU_ALPHA * (np.exp(y) - 1.0))


def _ref_forward(x, params):
    y = np.asarray(x, dtype=np.float64)
    for idx, blk in enumerate(params["blocks"]):
        stride, pad = (1, 0) if idx == 0 else (2, 1)
        y = _ref_convtranspose(y, np.asarray(blk["w"], np.float64), stride, pad)
        y = _ref_bn_selu(y, np.asarray(blk["gamma"], np.float64),
                         np.asarray(blk["beta"], np.float64))
    y = _ref_convtranspose(y, np.asarray(params["w_final"], np.float64), 2, 1)
    return np.tanh(y)


# ----------------------------------------------------------------------- main

if __name__ == "__main__":
    B, INPUT_DIM, OUTPUT_DIM, HIDDEN_DIM, OUTPUT_SIZE = 2, 32, 3, 8, 16

    key = jax.random.PRNGKey(0)
    key, kx = jax.random.split(key)
    x = jax.random.normal(kx, (B, INPUT_DIM, 1, 1), jnp.float32)
    params = init_params(key, INPUT_DIM, OUTPUT_DIM, HIDDEN_DIM, OUTPUT_SIZE)

    prep = prepare_params(params, B)          # one-time weight/mask reorganization (hoisted)

    fwd = jax.jit(cnn_neural_rasterizer_forward, static_argnames=("output_dim",))
    out = jax.block_until_ready(fwd(x, prep, output_dim=OUTPUT_DIM))

    assert out.shape == (B, OUTPUT_DIM, OUTPUT_SIZE, OUTPUT_SIZE), out.shape
    assert bool(np.isfinite(np.asarray(out)).all())

    ref = _ref_forward(np.asarray(x), params)
    max_err = float(np.max(np.abs(np.asarray(out, np.float64) - ref)))
    # Loose tolerance: deconv matmul operands are bf16 (f32 accumulation) per perf review.
    assert max_err < 5e-2, f"max abs error vs reference: {max_err}"

    print("KERNEL_OK")
</pallas_src>

<mosaic_0001>
module attributes {stable_mosaic.version = 11 : i64} {
  func.func @kernel(%arg0: memref<8x32xf32, #tpu.memory_space<vmem>>, %arg1: memref<32x384xbf16, #tpu.memory_space<vmem>>, %arg2: memref<1x16xf32, #tpu.memory_space<vmem>>, %arg3: memref<1x16xf32, #tpu.memory_space<vmem>>, %arg4: memref<384x16xf32, #tpu.memory_space<vmem>>, %arg5: memref<16x384xf32, #tpu.memory_space<vmem>>, %arg6: memref<8x384xf32, #tpu.memory_space<vmem>>, %arg7: memref<3x96x160xbf16, #tpu.memory_space<vmem>>, %arg8: memref<1x8xf32, #tpu.memory_space<vmem>>, %arg9: memref<1x8xf32, #tpu.memory_space<vmem>>, %arg10: memref<160x8xf32, #tpu.memory_space<vmem>>, %arg11: memref<8x160xf32, #tpu.memory_space<vmem>>, %arg12: memref<32x160xf32, #tpu.memory_space<vmem>>, %arg13: memref<3x80x128xbf16, #tpu.memory_space<vmem>>, %arg14: memref<64x128xf32, #tpu.memory_space<vmem>>, %arg15: memref<48x96xf32, #tpu.memory_space<vmem>>, %arg16: memref<80x80xf32, #tpu.memory_space<vmem>>) attributes {dimension_semantics = [], scalar_prefetch = 0 : i64, scratch_operands = 2 : i64, tpu.core_type = #tpu.core_type<tc>} {
    %c0 = arith.constant 0 : index
    %c0_0 = arith.constant 0 : index
    %0 = vector.load %arg0[%c0, %c0_0] : memref<8x32xf32, #tpu.memory_space<vmem>>, vector<8x32xf32>
    %1 = arith.truncf %0 : vector<8x32xf32> to vector<8x32xbf16>
    %c0_1 = arith.constant 0 : index
    %c0_2 = arith.constant 0 : index
    %2 = vector.load %arg1[%c0_1, %c0_2] : memref<32x384xbf16, #tpu.memory_space<vmem>>, vector<32x384xbf16>
    %cst = arith.constant dense<0.000000e+00> : vector<8x384xf32>
    %3 = tpu.matmul %1, %2, %cst {dimension_numbers = #tpu.dot_dimension_numbers<[1], [0], [0], [1], [0, 0, 1, 1], [], []>} : vector<8x32xbf16>, vector<32x384xbf16>, vector<8x384xf32> -> vector<8x384xf32>
    %c0_3 = arith.constant 0 : index
    %c0_4 = arith.constant 0 : index
    %4 = vector.load %arg2[%c0_3, %c0_4] : memref<1x16xf32, #tpu.memory_space<vmem>>, vector<1x16xf32>
    %c0_5 = arith.constant 0 : index
    %c0_6 = arith.constant 0 : index
    %5 = vector.load %arg3[%c0_5, %c0_6] : memref<1x16xf32, #tpu.memory_space<vmem>>, vector<1x16xf32>
    %c0_7 = arith.constant 0 : index
    %c0_8 = arith.constant 0 : index
    %6 = vector.load %arg4[%c0_7, %c0_8] : memref<384x16xf32, #tpu.memory_space<vmem>>, vector<384x16xf32>
    %c0_9 = arith.constant 0 : index
    %c0_10 = arith.constant 0 : index
    %7 = vector.load %arg5[%c0_9, %c0_10] : memref<16x384xf32, #tpu.memory_space<vmem>>, vector<16x384xf32>
    %cst_11 = arith.constant dense<0.000000e+00> : vector<384xf32>
    %8 = vector.multi_reduction <add>, %3, %cst_11 [0] : vector<8x384xf32> to vector<384xf32>
    %9 = vector.shape_cast %8 : vector<384xf32> to vector<1x384xf32>
    %10 = arith.mulf %3, %3 : vector<8x384xf32>
    %cst_12 = arith.constant dense<0.000000e+00> : vector<384xf32>
    %11 = vector.multi_reduction <add>, %10, %cst_12 [0] : vector<8x384xf32> to vector<384xf32>
    %12 = vector.shape_cast %11 : vector<384xf32> to vector<1x384xf32>
    %13 = tpu.concatenate %9, %12 in 0 : vector<1x384xf32>, vector<1x384xf32> -> vector<2x384xf32>
    %cst_13 = arith.constant dense<0.000000e+00> : vector<2x16xf32>
    %14 = tpu.matmul %13, %6, %cst_13 {dimension_numbers = #tpu.dot_dimension_numbers<[1], [0], [0], [1], [0, 0, 1, 1], [], []>} : vector<2x384xf32>, vector<384x16xf32>, vector<2x16xf32> -> vector<2x16xf32>
    %15 = vector.extract_strided_slice %14 {offsets = [0, 0], sizes = [1, 16], strides = [1, 1]} : vector<2x16xf32> to vector<1x16xf32>
    %cst_14 = arith.constant 3.125000e-02 : f32
    %16 = vector.broadcast %cst_14 : f32 to vector<1x16xf32>
    %17 = arith.mulf %15, %16 : vector<1x16xf32>
    %18 = vector.extract_strided_slice %14 {offsets = [1, 0], sizes = [1, 16], strides = [1, 1]} : vector<2x16xf32> to vector<1x16xf32>
    %cst_15 = arith.constant 3.125000e-02 : f32
    %19 = vector.broadcast %cst_15 : f32 to vector<1x16xf32>
    %20 = arith.mulf %18, %19 : vector<1x16xf32>
    %21 = arith.mulf %17, %17 : vector<1x16xf32>
    %22 = arith.subf %20, %21 : vector<1x16xf32>
    %cst_16 = arith.constant 9.99999974E-6 : f32
    %23 = vector.broadcast %cst_16 : f32 to vector<1x16xf32>
    %24 = arith.addf %22, %23 : vector<1x16xf32>
    %25 = math.rsqrt %24 : vector<1x16xf32>
    %26 = arith.mulf %4, %25 : vector<1x16xf32>
    %27 = arith.mulf %17, %26 : vector<1x16xf32>
    %28 = arith.subf %5, %27 : vector<1x16xf32>
    %29 = tpu.concatenate %26, %28 in 0 : vector<1x16xf32>, vector<1x16xf32> -> vector<2x16xf32>
    %cst_17 = arith.constant dense<0.000000e+00> : vector<2x384xf32>
    %30 = tpu.matmul %29, %7, %cst_17 {dimension_numbers = #tpu.dot_dimension_numbers<[1], [0], [0], [1], [0, 0, 1, 1], [], []>} : vector<2x16xf32>, vector<16x384xf32>, vector<2x384xf32> -> vector<2x384xf32>
    %31 = vector.extract_strided_slice %30 {offsets = [0, 0], sizes = [1, 384], strides = [1, 1]} : vector<2x384xf32> to vector<1x384xf32>
    %32 = vector.broadcast %31 : vector<1x384xf32> to vector<8x384xf32>
    %33 = arith.mulf %3, %32 : vector<8x384xf32>
    %34 = vector.extract_strided_slice %30 {offsets = [1, 0], sizes = [1, 384], strides = [1, 1]} : vector<2x384xf32> to vector<1x384xf32>
    %35 = vector.broadcast %34 : vector<1x384xf32> to vector<8x384xf32>
    %36 = arith.addf %33, %35 : vector<8x384xf32>
    %cst_18 = arith.constant 0.000000e+00 : f32
    %37 = vector.broadcast %cst_18 : f32 to vector<8x384xf32>
    %38 = arith.cmpf ogt, %36, %37 : vector<8x384xf32>
    %39 = math.exp %36 : vector<8x384xf32>
    %cst_19 = arith.constant 1.000000e+00 : f32
    %40 = vector.broadcast %cst_19 : f32 to vector<8x384xf32>
    %41 = arith.subf %39, %40 : vector<8x384xf32>
    %cst_20 = arith.constant 1.67326319 : f32
    %42 = vector.broadcast %cst_20 : f32 to vector<8x384xf32>
    %43 = arith.mulf %42, %41 : vector<8x384xf32>
    %44 = arith.select %38, %36, %43 : vector<8x384xi1>, vector<8x384xf32>
    %cst_21 = arith.constant 1.05070102 : f32
    %45 = vector.broadcast %cst_21 : f32 to vector<8x384xf32>
    %46 = arith.mulf %45, %44 : vector<8x384xf32>
    %c0_22 = arith.constant 0 : index
    %c0_23 = arith.constant 0 : index
    %47 = vector.load %arg6[%c0_22, %c0_23] : memref<8x384xf32, #tpu.memory_space<vmem>>, vector<8x384xf32>
    %48 = arith.mulf %46, %47 : vector<8x384xf32>
    %cst_24 = arith.constant 0.000000e+00 : f32
    %49 = vector.broadcast %cst_24 : f32 to vector<8x96xf32>
    %c0_25 = arith.constant 0 : index
    %c0_26 = arith.constant 0 : index
    %50 = vector.load %arg15[%c0_25, %c0_26] : memref<48x96xf32, #tpu.memory_space<vmem>>, vector<8x96xf32>
    tpu.vector_store %arg15[%c0_25, %c0_26], %49 {strides = array<i32>} : memref<48x96xf32, #tpu.memory_space<vmem>>, vector<8x96xf32>,
    %c40 = arith.constant 40 : index
    %c0_27 = arith.constant 0 : index
    %51 = vector.load %arg15[%c40, %c0_27] : memref<48x96xf32, #tpu.memory_space<vmem>>, vector<8x96xf32>
    tpu.vector_store %arg15[%c40, %c0_27], %49 {strides = array<i32>} : memref<48x96xf32, #tpu.memory_space<vmem>>, vector<8x96xf32>,
    %52 = vector.extract_strided_slice %48 {offsets = [0, 0], sizes = [8, 96], strides = [1, 1]} : vector<8x384xf32> to vector<8x96xf32>
    %c8 = arith.constant 8 : index
    %c0_28 = arith.constant 0 : index
    %53 = vector.load %arg15[%c8, %c0_28] : memref<48x96xf32, #tpu.memory_space<vmem>>, vector<8x96xf32>
    tpu.vector_store %arg15[%c8, %c0_28], %52 {strides = array<i32>} : memref<48x96xf32, #tpu.memory_space<vmem>>, vector<8x96xf32>,
    %54 = vector.extract_strided_slice %48 {offsets = [0, 96], sizes = [8, 96], strides = [1, 1]} : vector<8x384xf32> to vector<8x96xf32>
    %c16 = arith.constant 16 : index
    %c0_29 = arith.constant 0 : index
    %55 = vector.load %arg15[%c16, %c0_29] : memref<48x96xf32, #tpu.memory_space<vmem>>, vector<8x96xf32>
    tpu.vector_store %arg15[%c16, %c0_29], %54 {strides = array<i32>} : memref<48x96xf32, #tpu.memory_space<vmem>>, vector<8x96xf32>,
    %56 = vector.extract_strided_slice %48 {offsets = [0, 192], sizes = [8, 96], strides = [1, 1]} : vector<8x384xf32> to vector<8x96xf32>
    %c24 = arith.constant 24 : index
    %c0_30 = arith.constant 0 : index
    %57 = vector.load %arg15[%c24, %c0_30] : memref<48x96xf32, #tpu.memory_space<vmem>>, vector<8x96xf32>
    tpu.vector_store %arg15[%c24, %c0_30], %56 {strides = array<i32>} : memref<48x96xf32, #tpu.memory_space<vmem>>, vector<8x96xf32>,
    %58 = vector.extract_strided_slice %48 {offsets = [0, 288], sizes = [8, 96], strides = [1, 1]} : vector<8x384xf32> to vector<8x96xf32>
    %c32 = arith.constant 32 : index
    %c0_31 = arith.constant 0 : index
    %59 = vector.load %arg15[%c32, %c0_31] : memref<48x96xf32, #tpu.memory_space<vmem>>, vector<8x96xf32>
    tpu.vector_store %arg15[%c32, %c0_31], %58 {strides = array<i32>} : memref<48x96xf32, #tpu.memory_space<vmem>>, vector<8x96xf32>,
    %c0_32 = arith.constant 0 : index
    %c0_33 = arith.constant 0 : index
    %60 = vector.load %arg15[%c0_32, %c0_33] : memref<48x96xf32, #tpu.memory_space<vmem>>, vector<48x96xf32>
    %61 = arith.truncf %60 : vector<48x96xf32> to vector<48x96xbf16>
    %62 = vector.extract_strided_slice %61 {offsets = [0, 0], sizes = [32, 96], strides = [1, 1]} : vector<48x96xbf16> to vector<32x96xbf16>
    %c0_34 = arith.constant 0 : index
    %c0_35 = arith.constant 0 : index
    %c0_36 = arith.constant 0 : index
    %63 = vector.load %arg7[%c0_34, %c0_35, %c0_36] : memref<3x96x160xbf16, #tpu.memory_space<vmem>>, vector<1x96x160xbf16>
    %64 = vector.shape_cast %63 : vector<1x96x160xbf16> to vector<96x160xbf16>
    %cst_37 = arith.constant dense<0.000000e+00> : vector<32x160xf32>
    %65 = tpu.matmul %62, %64, %cst_37 {dimension_numbers = #tpu.dot_dimension_numbers<[1], [0], [0], [1], [0, 0, 1, 1], [], []>} : vector<32x96xbf16>, vector<96x160xbf16>, vector<32x160xf32> -> vector<32x160xf32>
    %66 = vector.extract_strided_slice %61 {offsets = [8, 0], sizes = [32, 96], strides = [1, 1]} : vector<48x96xbf16> to vector<32x96xbf16>
    %c1 = arith.constant 1 : index
    %c0_38 = arith.constant 0 : index
    %c0_39 = arith.constant 0 : index
    %67 = vector.load %arg7[%c1, %c0_38, %c0_39] : memref<3x96x160xbf16, #tpu.memory_space<vmem>>, vector<1x96x160xbf16>
    %68 = vector.shape_cast %67 : vector<1x96x160xbf16> to vector<96x160xbf16>
    %cst_40 = arith.constant dense<0.000000e+00> : vector<32x160xf32>
    %69 = tpu.matmul %66, %68, %cst_40 {dimension_numbers = #tpu.dot_dimension_numbers<[1], [0], [0], [1], [0, 0, 1, 1], [], []>} : vector<32x96xbf16>, vector<96x160xbf16>, vector<32x160xf32> -> vector<32x160xf32>
    %70 = arith.addf %65, %69 : vector<32x160xf32>
    %71 = vector.extract_strided_slice %61 {offsets = [16, 0], sizes = [32, 96], strides = [1, 1]} : vector<48x96xbf16> to vector<32x96xbf16>
    %c2 = arith.constant 2 : index
    %c0_41 = arith.constant 0 : index
    %c0_42 = arith.constant 0 : index
    %72 = vector.load %arg7[%c2, %c0_41, %c0_42] : memref<3x96x160xbf16, #tpu.memory_space<vmem>>, vector<1x96x160xbf16>
    %73 = vector.shape_cast %72 : vector<1x96x160xbf16> to vector<96x160xbf16>
    %cst_43 = arith.constant dense<0.000000e+00> : vector<32x160xf32>
    %74 = tpu.matmul %71, %73, %cst_43 {dimension_numbers = #tpu.dot_dimension_numbers<[1], [0], [0], [1], [0, 0, 1, 1], [], []>} : vector<32x96xbf16>, vector<96x160xbf16>, vector<32x160xf32> -> vector<32x160xf32>
    %75 = arith.addf %70, %74 : vector<32x160xf32>
    %c0_44 = arith.constant 0 : index
    %c0_45 = arith.constant 0 : index
    %76 = vector.load %arg8[%c0_44, %c0_45] : memref<1x8xf32, #tpu.memory_space<vmem>>, vector<1x8xf32>
    %c0_46 = arith.constant 0 : index
    %c0_47 = arith.constant 0 : index
    %77 = vector.load %arg9[%c0_46, %c0_47] : memref<1x8xf32, #tpu.memory_space<vmem>>, vector<1x8xf32>
    %c0_48 = arith.constant 0 : index
    %c0_49 = arith.constant 0 : index
    %78 = vector.load %arg10[%c0_48, %c0_49] : memref<160x8xf32, #tpu.memory_space<vmem>>, vector<160x8xf32>
    %c0_50 = arith.constant 0 : index
    %c0_51 = arith.constant 0 : index
    %79 = vector.load %arg11[%c0_50, %c0_51] : memref<8x160xf32, #tpu.memory_space<vmem>>, vector<8x160xf32>
    %cst_52 = arith.constant dense<0.000000e+00> : vector<160xf32>
    %80 = vector.multi_reduction <add>, %75, %cst_52 [0] : vector<32x160xf32> to vector<160xf32>
    %81 = vector.shape_cast %80 : vector<160xf32> to vector<1x160xf32>
    %82 = arith.mulf %75, %75 : vector<32x160xf32>
    %cst_53 = arith.constant dense<0.000000e+00> : vector<160xf32>
    %83 = vector.multi_reduction <add>, %82, %cst_53 [0] : vector<32x160xf32> to vector<160xf32>
    %84 = vector.shape_cast %83 : vector<160xf32> to vector<1x160xf32>
    %85 = tpu.concatenate %81, %84 in 0 : vector<1x160xf32>, vector<1x160xf32> -> vector<2x160xf32>
    %cst_54 = arith.constant dense<0.000000e+00> : vector<2x8xf32>
    %86 = tpu.matmul %85, %78, %cst_54 {dimension_numbers = #tpu.dot_dimension_numbers<[1], [0], [0], [1], [0, 0, 1, 1], [], []>} : vector<2x160xf32>, vector<160x8xf32>, vector<2x8xf32> -> vector<2x8xf32>
    %87 = vector.extract_strided_slice %86 {offsets = [0, 0], sizes = [1, 8], strides = [1, 1]} : vector<2x8xf32> to vector<1x8xf32>
    %cst_55 = arith.constant 7.812500e-03 : f32
    %88 = vector.broadcast %cst_55 : f32 to vector<1x8xf32>
    %89 = arith.mulf %87, %88 : vector<1x8xf32>
    %90 = vector.extract_strided_slice %86 {offsets = [1, 0], sizes = [1, 8], strides = [1, 1]} : vector<2x8xf32> to vector<1x8xf32>
    %cst_56 = arith.constant 7.812500e-03 : f32
    %91 = vector.broadcast %cst_56 : f32 to vector<1x8xf32>
    %92 = arith.mulf %90, %91 : vector<1x8xf32>
    %93 = arith.mulf %89, %89 : vector<1x8xf32>
    %94 = arith.subf %92, %93 : vector<1x8xf32>
    %cst_57 = arith.constant 9.99999974E-6 : f32
    %95 = vector.broadcast %cst_57 : f32 to vector<1x8xf32>
    %96 = arith.addf %94, %95 : vector<1x8xf32>
    %97 = math.rsqrt %96 : vector<1x8xf32>
    %98 = arith.mulf %76, %97 : vector<1x8xf32>
    %99 = arith.mulf %89, %98 : vector<1x8xf32>
    %100 = arith.subf %77, %99 : vector<1x8xf32>
    %101 = tpu.concatenate %98, %100 in 0 : vector<1x8xf32>, vector<1x8xf32> -> vector<2x8xf32>
    %cst_58 = arith.constant dense<0.000000e+00> : vector<2x160xf32>
    %102 = tpu.matmul %101, %79, %cst_58 {dimension_numbers = #tpu.dot_dimension_numbers<[1], [0], [0], [1], [0, 0, 1, 1], [], []>} : vector<2x8xf32>, vector<8x160xf32>, vector<2x160xf32> -> vector<2x160xf32>
    %103 = vector.extract_strided_slice %102 {offsets = [0, 0], sizes = [1, 160], strides = [1, 1]} : vector<2x160xf32> to vector<1x160xf32>
    %104 = vector.broadcast %103 : vector<1x160xf32> to vector<32x160xf32>
    %105 = arith.mulf %75, %104 : vector<32x160xf32>
    %106 = vector.extract_strided_slice %102 {offsets = [1, 0], sizes = [1, 160], strides = [1, 1]} : vector<2x160xf32> to vector<1x160xf32>
    %107 = vector.broadcast %106 : vector<1x160xf32> to vector<32x160xf32>
    %108 = arith.addf %105, %107 : vector<32x160xf32>
    %cst_59 = arith.constant 0.000000e+00 : f32
    %109 = vector.broadcast %cst_59 : f32 to vector<32x160xf32>
    %110 = arith.cmpf ogt, %108, %109 : vector<32x160xf32>
    %111 = math.exp %108 : vector<32x160xf32>
    %cst_60 = arith.constant 1.000000e+00 : f32
    %112 = vector.broadcast %cst_60 : f32 to vector<32x160xf32>
    %113 = arith.subf %111, %112 : vector<32x160xf32>
    %cst_61 = arith.constant 1.67326319 : f32
    %114 = vector.broadcast %cst_61 : f32 to vector<32x160xf32>
    %115 = arith.mulf %114, %113 : vector<32x160xf32>
    %116 = arith.select %110, %108, %115 : vector<32x160xi1>, vector<32x160xf32>
    %cst_62 = arith.constant 1.05070102 : f32
    %117 = vector.broadcast %cst_62 : f32 to vector<32x160xf32>
    %118 = arith.mulf %117, %116 : vector<32x160xf32>
    %c0_63 = arith.constant 0 : index
    %c0_64 = arith.constant 0 : index
    %119 = vector.load %arg12[%c0_63, %c0_64] : memref<32x160xf32, #tpu.memory_space<vmem>>, vector<32x160xf32>
    %120 = arith.mulf %118, %119 : vector<32x160xf32>
    %cst_65 = arith.constant 0.000000e+00 : f32
    %121 = vector.broadcast %cst_65 : f32 to vector<8x80xf32>
    %c0_66 = arith.constant 0 : index
    %c0_67 = arith.constant 0 : index
    %122 = vector.load %arg16[%c0_66, %c0_67] : memref<80x80xf32, #tpu.memory_space<vmem>>, vector<8x80xf32>
    tpu.vector_store %arg16[%c0_66, %c0_67], %121 {strides = array<i32>} : memref<80x80xf32, #tpu.memory_space<vmem>>, vector<8x80xf32>,
    %c72 = arith.constant 72 : index
    %c0_68 = arith.constant 0 : index
    %123 = vector.load %arg16[%c72, %c0_68] : memref<80x80xf32, #tpu.memory_space<vmem>>, vector<8x80xf32>
    tpu.vector_store %arg16[%c72, %c0_68], %121 {strides = array<i32>} : memref<80x80xf32, #tpu.memory_space<vmem>>, vector<8x80xf32>,
    %124 = vector.extract_strided_slice %120 {offsets = [0, 0], sizes = [8, 80], strides = [1, 1]} : vector<32x160xf32> to vector<8x80xf32>
    %c8_69 = arith.constant 8 : index
    %c0_70 = arith.constant 0 : index
    %125 = vector.load %arg16[%c8_69, %c0_70] : memref<80x80xf32, #tpu.memory_space<vmem>>, vector<8x80xf32>
    tpu.vector_store %arg16[%c8_69, %c0_70], %124 {strides = array<i32>} : memref<80x80xf32, #tpu.memory_space<vmem>>, vector<8x80xf32>,
    %126 = vector.extract_strided_slice %120 {offsets = [0, 80], sizes = [8, 80], strides = [1, 1]} : vector<32x160xf32> to vector<8x80xf32>
    %c16_71 = arith.constant 16 : index
    %c0_72 = arith.constant 0 : index
    %127 = vector.load %arg16[%c16_71, %c0_72] : memref<80x80xf32, #tpu.memory_space<vmem>>, vector<8x80xf32>
    tpu.vector_store %arg16[%c16_71, %c0_72], %126 {strides = array<i32>} : memref<80x80xf32, #tpu.memory_space<vmem>>, vector<8x80xf32>,
    %128 = vector.extract_strided_slice %120 {offsets = [8, 0], sizes = [8, 80], strides = [1, 1]} : vector<32x160xf32> to vector<8x80xf32>
    %c24_73 = arith.constant 24 : index
    %c0_74 = arith.constant 0 : index
    %129 = vector.load %arg16[%c24_73, %c0_74] : memref<80x80xf32, #tpu.memory_space<vmem>>, vector<8x80xf32>
    tpu.vector_store %arg16[%c24_73, %c0_74], %128 {strides = array<i32>} : memref<80x80xf32, #tpu.memory_space<vmem>>, vector<8x80xf32>,
    %130 = vector.extract_strided_slice %120 {offsets = [8, 80], sizes = [8, 80], strides = [1, 1]} : vector<32x160xf32> to vector<8x80xf32>
    %c32_75 = arith.constant 32 : index
    %c0_76 = arith.constant 0 : index
    %131 = vector.load %arg16[%c32_75, %c0_76] : memref<80x80xf32, #tpu.memory_space<vmem>>, vector<8x80xf32>
    tpu.vector_store %arg16[%c32_75, %c0_76], %130 {strides = array<i32>} : memref<80x80xf32, #tpu.memory_space<vmem>>, vector<8x80xf32>,
    %132 = vector.extract_strided_slice %120 {offsets = [16, 0], sizes = [8, 80], strides = [1, 1]} : vector<32x160xf32> to vector<8x80xf32>
    %c40_77 = arith.constant 40 : index
    %c0_78 = arith.constant 0 : index
    %133 = vector.load %arg16[%c40_77, %c0_78] : memref<80x80xf32, #tpu.memory_space<vmem>>, vector<8x80xf32>
    tpu.vector_store %arg16[%c40_77, %c0_78], %132 {strides = array<i32>} : memref<80x80xf32, #tpu.memory_space<vmem>>, vector<8x80xf32>,
    %134 = vector.extract_strided_slice %120 {offsets = [16, 80], sizes = [8, 80], strides = [1, 1]} : vector<32x160xf32> to vector<8x80xf32>
    %c48 = arith.constant 48 : index
    %c0_79 = arith.constant 0 : index
    %135 = vector.load %arg16[%c48, %c0_79] : memref<80x80xf32, #tpu.memory_space<vmem>>, vector<8x80xf32>
    tpu.vector_store %arg16[%c48, %c0_79], %134 {strides = array<i32>} : memref<80x80xf32, #tpu.memory_space<vmem>>, vector<8x80xf32>,
    %136 = vector.extract_strided_slice %120 {offsets = [24, 0], sizes = [8, 80], strides = [1, 1]} : vector<32x160xf32> to vector<8x80xf32>
    %c56 = arith.constant 56 : index
    %c0_80 = arith.constant 0 : index
    %137 = vector.load %arg16[%c56, %c0_80] : memref<80x80xf32, #tpu.memory_space<vmem>>, vector<8x80xf32>
    tpu.vector_store %arg16[%c56, %c0_80], %136 {strides = array<i32>} : memref<80x80xf32, #tpu.memory_space<vmem>>, vector<8x80xf32>,
    %138 = vector.extract_strided_slice %120 {offsets = [24, 80], sizes = [8, 80], strides = [1, 1]} : vector<32x160xf32> to vector<8x80xf32>
    %c64 = arith.constant 64 : index
    %c0_81 = arith.constant 0 : index
    %139 = vector.load %arg16[%c64, %c0_81] : memref<80x80xf32, #tpu.memory_space<vmem>>, vector<8x80xf32>
    tpu.vector_store %arg16[%c64, %c0_81], %138 {strides = array<i32>} : memref<80x80xf32, #tpu.memory_space<vmem>>, vector<8x80xf32>,
    %c0_82 = arith.constant 0 : index
    %c0_83 = arith.constant 0 : index
    %140 = vector.load %arg16[%c0_82, %c0_83] : memref<80x80xf32, #tpu.memory_space<vmem>>, vector<80x80xf32>
    %141 = arith.truncf %140 : vector<80x80xf32> to vector<80x80xbf16>
    %142 = vector.extract_strided_slice %141 {offsets = [0, 0], sizes = [64, 80], strides = [1, 1]} : vector<80x80xbf16> to vector<64x80xbf16>
    %c0_84 = arith.constant 0 : index
    %c0_85 = arith.constant 0 : index
    %c0_86 = arith.constant 0 : index
    %143 = vector.load %arg13[%c0_84, %c0_85, %c0_86] : memref<3x80x128xbf16, #tpu.memory_space<vmem>>, vector<1x80x128xbf16>
    %144 = vector.shape_cast %143 : vector<1x80x128xbf16> to vector<80x128xbf16>
    %cst_87 = arith.constant dense<0.000000e+00> : vector<64x128xf32>
    %145 = tpu.matmul %142, %144, %cst_87 {dimension_numbers = #tpu.dot_dimension_numbers<[1], [0], [0], [1], [0, 0, 1, 1], [], []>} : vector<64x80xbf16>, vector<80x128xbf16>, vector<64x128xf32> -> vector<64x128xf32>
    %146 = vector.extract_strided_slice %141 {offsets = [8, 0], sizes = [64, 80], strides = [1, 1]} : vector<80x80xbf16> to vector<64x80xbf16>
    %c1_88 = arith.constant 1 : index
    %c0_89 = arith.constant 0 : index
    %c0_90 = arith.constant 0 : index
    %147 = vector.load %arg13[%c1_88, %c0_89, %c0_90] : memref<3x80x128xbf16, #tpu.memory_space<vmem>>, vector<1x80x128xbf16>
    %148 = vector.shape_cast %147 : vector<1x80x128xbf16> to vector<80x128xbf16>
    %cst_91 = arith.constant dense<0.000000e+00> : vector<64x128xf32>
    %149 = tpu.matmul %146, %148, %cst_91 {dimension_numbers = #tpu.dot_dimension_numbers<[1], [0], [0], [1], [0, 0, 1, 1], [], []>} : vector<64x80xbf16>, vector<80x128xbf16>, vector<64x128xf32> -> vector<64x128xf32>
    %150 = arith.addf %145, %149 : vector<64x128xf32>
    %151 = vector.extract_strided_slice %141 {offsets = [16, 0], sizes = [64, 80], strides = [1, 1]} : vector<80x80xbf16> to vector<64x80xbf16>
    %c2_92 = arith.constant 2 : index
    %c0_93 = arith.constant 0 : index
    %c0_94 = arith.constant 0 : index
    %152 = vector.load %arg13[%c2_92, %c0_93, %c0_94] : memref<3x80x128xbf16, #tpu.memory_space<vmem>>, vector<1x80x128xbf16>
    %153 = vector.shape_cast %152 : vector<1x80x128xbf16> to vector<80x128xbf16>
    %cst_95 = arith.constant dense<0.000000e+00> : vector<64x128xf32>
    %154 = tpu.matmul %151, %153, %cst_95 {dimension_numbers = #tpu.dot_dimension_numbers<[1], [0], [0], [1], [0, 0, 1, 1], [], []>} : vector<64x80xbf16>, vector<80x128xbf16>, vector<64x128xf32> -> vector<64x128xf32>
    %155 = arith.addf %150, %154 : vector<64x128xf32>
    %156 = math.tanh %155 : vector<64x128xf32>
    %c0_96 = arith.constant 0 : index
    %c0_97 = arith.constant 0 : index
    %157 = vector.load %arg14[%c0_96, %c0_97] : memref<64x128xf32, #tpu.memory_space<vmem>>, vector<64x128xf32>
    tpu.vector_store %arg14[%c0_96, %c0_97], %156 {strides = array<i32>} : memref<64x128xf32, #tpu.memory_space<vmem>>, vector<64x128xf32>,
    return
  }
}

</mosaic_0001>

<llo_original>
// kernel: cnn_neural_rasterizer_forward.1
$region0: #{cnn_neural_rasterizer_forward.1}
  #allocation0 [shape = 'u32[]', space=smem, size = 0x4, offset = 0x4, fixed_abs, tag = 'smem constant byte address 0x4 - core index']
  #allocation1 [shape = 'u32[144,128]{1,0:T(1,128)}', space=vmem, size = 0x12000, scoped, tag = 'internal scratch']
  #allocation2 [shape = 'f32[48,96]{1,0:T(8,128)}', space=vmem, size = 0x6000, scoped, tag = 'scratch operand']
  #allocation3 [shape = 'f32[80,80]{1,0:T(8,128)}', space=vmem, size = 0xa000, scoped, tag = 'scratch operand']
  %s0 = inlined_call_operand.vmem [shape: f32[8,32], index: 0, kind: input, shape index: {}]
  %s1 = inlined_call_operand.vmem [shape: bf16[32,384], index: 1, kind: input, shape index: {}]
  %s2 = inlined_call_operand.vmem [shape: f32[1,16], index: 2, kind: input, shape index: {}]
  %s3 = inlined_call_operand.vmem [shape: f32[1,16], index: 3, kind: input, shape index: {}]
  %s4 = inlined_call_operand.vmem [shape: f32[384,16], index: 4, kind: input, shape index: {}]
  %s5 = inlined_call_operand.vmem [shape: f32[16,384], index: 5, kind: input, shape index: {}]
  %s6 = inlined_call_operand.vmem [shape: f32[8,384], index: 6, kind: input, shape index: {}]
  %s7 = inlined_call_operand.vmem [shape: bf16[3,96,160], index: 7, kind: input, shape index: {}]
  %s8 = inlined_call_operand.vmem [shape: f32[1,8], index: 8, kind: input, shape index: {}]
  %s9 = inlined_call_operand.vmem [shape: f32[1,8], index: 9, kind: input, shape index: {}]
  %s10 = inlined_call_operand.vmem [shape: f32[160,8], index: 10, kind: input, shape index: {}]
  %s11 = inlined_call_operand.vmem [shape: f32[8,160], index: 11, kind: input, shape index: {}]
  %s12 = inlined_call_operand.vmem [shape: f32[32,160], index: 12, kind: input, shape index: {}]
  %s13 = inlined_call_operand.vmem [shape: bf16[3,80,128], index: 13, kind: input, shape index: {}]
  %s14 = inlined_call_operand.vmem [shape: f32[64,128], index: 14, kind: output, shape index: {}]
  %s15 = sld [smem:[#allocation0]]
  $region66: #{cnn_neural_rasterizer_forward.1} parent=0
    _
  %s17 = ssub.s32 1, %s15
  %s18 = scalar_select 0, %s17, %s15
  // Predicated region
  $region2: #{cnn_neural_rasterizer_forward.1} parent=0 // pred_check
    _
  $region3: #{cnn_neural_rasterizer_forward.1} parent=0 // pred_check_branch
    %20 = sbr.rel (0) target = $region5
  $region4: #{cnn_neural_rasterizer_forward.1} parent=0 // pred_region
    _
  $region5: #{cnn_neural_rasterizer_forward.1} parent=0 // pred_fallthru
    _
  // Predicated region
  $region6: #{cnn_neural_rasterizer_forward.1} parent=0 // pred_check
    _
  $region7: #{cnn_neural_rasterizer_forward.1} parent=0 // pred_check_branch
    %22 = sbr.rel (0) target = $region9
  $region8: #{cnn_neural_rasterizer_forward.1} parent=0 // pred_region
    _
  $region9: #{cnn_neural_rasterizer_forward.1} parent=0 // pred_fallthru
    _
  // Predicated region
  $region10: #{cnn_neural_rasterizer_forward.1} parent=0 // pred_check
    _
  $region11: #{cnn_neural_rasterizer_forward.1} parent=0 // pred_check_branch
    %24 = sbr.rel (0) target = $region13
  $region12: #{cnn_neural_rasterizer_forward.1} parent=0 // pred_region
    _
  $region13: #{cnn_neural_rasterizer_forward.1} parent=0 // pred_fallthru
    _
  // Predicated region
  $region14: #{cnn_neural_rasterizer_forward.1} parent=0 // pred_check
    _
  $region15: #{cnn_neural_rasterizer_forward.1} parent=0 // pred_check_branch
    %26 = sbr.rel (0) target = $region17
  $region16: #{cnn_neural_rasterizer_forward.1} parent=0 // pred_region
    _
  $region17: #{cnn_neural_rasterizer_forward.1} parent=0 // pred_fallthru
    _
  // Predicated region
  $region18: #{cnn_neural_rasterizer_forward.1} parent=0 // pred_check
    _
  $region19: #{cnn_neural_rasterizer_forward.1} parent=0 // pred_check_branch
    %28 = sbr.rel (0) target = $region21
  $region20: #{cnn_neural_rasterizer_forward.1} parent=0 // pred_region
    _
  $region21: #{cnn_neural_rasterizer_forward.1} parent=0 // pred_fallthru
    _
  // Predicated region
  $region22: #{cnn_neural_rasterizer_forward.1} parent=0 // pred_check
    _
  $region23: #{cnn_neural_rasterizer_forward.1} parent=0 // pred_check_branch
    %30 = sbr.rel (0) target = $region25
  $region24: #{cnn_neural_rasterizer_forward.1} parent=0 // pred_region
    _
  $region25: #{cnn_neural_rasterizer_forward.1} parent=0 // pred_fallthru
    _
  // Predicated region
  $region26: #{cnn_neural_rasterizer_forward.1} parent=0 // pred_check
    _
  $region27: #{cnn_neural_rasterizer_forward.1} parent=0 // pred_check_branch
    %32 = sbr.rel (0) target = $region29
  $region28: #{cnn_neural_rasterizer_forward.1} parent=0 // pred_region
    _
  $region29: #{cnn_neural_rasterizer_forward.1} parent=0 // pred_fallthru
    _
  // Predicated region
  $region30: #{cnn_neural_rasterizer_forward.1} parent=0 // pred_check
    _
  $region31: #{cnn_neural_rasterizer_forward.1} parent=0 // pred_check_branch
    %34 = sbr.rel (0) target = $region33
  $region32: #{cnn_neural_rasterizer_forward.1} parent=0 // pred_region
    _
  $region33: #{cnn_neural_rasterizer_forward.1} parent=0 // pred_fallthru
    _
  // Predicated region
  $region34: #{cnn_neural_rasterizer_forward.1} parent=0 // pred_check
    _
  $region35: #{cnn_neural_rasterizer_forward.1} parent=0 // pred_check_branch
    %36 = sbr.rel (0) target = $region37
  $region36: #{cnn_neural_rasterizer_forward.1} parent=0 // pred_region
    _
  $region37: #{cnn_neural_rasterizer_forward.1} parent=0 // pred_fallthru
    _
  // Predicated region
  $region38: #{cnn_neural_rasterizer_forward.1} parent=0 // pred_check
    _
  $region39: #{cnn_neural_rasterizer_forward.1} parent=0 // pred_check_branch
    %38 = sbr.rel (0) target = $region41
  $region40: #{cnn_neural_rasterizer_forward.1} parent=0 // pred_region
    _
  $region41: #{cnn_neural_rasterizer_forward.1} parent=0 // pred_fallthru
    _
  // Predicated region
  $region42: #{cnn_neural_rasterizer_forward.1} parent=0 // pred_check
    _
  $region43: #{cnn_neural_rasterizer_forward.1} parent=0 // pred_check_branch
    %40 = sbr.rel (0) target = $region45
  $region44: #{cnn_neural_rasterizer_forward.1} parent=0 // pred_region
    _
  $region45: #{cnn_neural_rasterizer_forward.1} parent=0 // pred_fallthru
    _
  // Predicated region
  $region46: #{cnn_neural_rasterizer_forward.1} parent=0 // pred_check
    _
  $region47: #{cnn_neural_rasterizer_forward.1} parent=0 // pred_check_branch
    %42 = sbr.rel (0) target = $region49
  $region48: #{cnn_neural_rasterizer_forward.1} parent=0 // pred_region
    _
  $region49: #{cnn_neural_rasterizer_forward.1} parent=0 // pred_fallthru
    _
  // Predicated region
  $region50: #{cnn_neural_rasterizer_forward.1} parent=0 // pred_check
    _
  $region51: #{cnn_neural_rasterizer_forward.1} parent=0 // pred_check_branch
    %44 = sbr.rel (0) target = $region53
  $region52: #{cnn_neural_rasterizer_forward.1} parent=0 // pred_region
    _
  $region53: #{cnn_neural_rasterizer_forward.1} parent=0 // pred_fallthru
    _
  // Predicated region
  $region54: #{cnn_neural_rasterizer_forward.1} parent=0 // pred_check
    _
  $region55: #{cnn_neural_rasterizer_forward.1} parent=0 // pred_check_branch
    %46 = sbr.rel (0) target = $region57
  $region56: #{cnn_neural_rasterizer_forward.1} parent=0 // pred_region
    _
  $region57: #{cnn_neural_rasterizer_forward.1} parent=0 // pred_fallthru
    _
  %v48 = vld [vmem:[%s0] sm:$0xff]
  %v49 = vpack.c.bf16 %v48, %v48
  %v50 = vld [vmem:[%s1] sm:$0xff]
  %v51 = vld [vmem:[%s1 + $0x8] sm:$0xf]
  %v52 = vld [vmem:[%s1 + $0xc] sm:$0xff]
  %v53 = vld [vmem:[%s1 + $0x14] sm:$0xf]
  %v54 = vld [vmem:[%s1 + $0x18] sm:$0xff]
  %v55 = vld [vmem:[%s1 + $0x20] sm:$0xf]
  %v56 = vld [vmem:[%s1 + $0x24] sm:$0xff]
  %v57 = vld [vmem:[%s1 + $0x2c] sm:$0xf]
  %v66 = vunpack.c.l.b16 %v50
  %v67 = vunpack.c.h.b16 %v50
  %v68 = vunpack.c.l.b16 %v51
  %v69 = vunpack.c.l.b16 %v52
  %v70 = vunpack.c.h.b16 %v52
  %v71 = vunpack.c.l.b16 %v53
  %v72 = vunpack.c.l.b16 %v54
  %v73 = vunpack.c.h.b16 %v54
  %v74 = vunpack.c.l.b16 %v55
  %v75 = vunpack.c.l.b16 %v56
  %v76 = vunpack.c.h.b16 %v56
  %v77 = vunpack.c.l.b16 %v57
  %v78 = vpack.c.b16 %v69, %v66
  %v79 = vpack.c.b16 %v70, %v67
  %v80 = vpack.c.b16 %v71, %v68
  %v81 = vpack.c.b16 %v75, %v72
  %v82 = vpack.c.b16 %v76, %v73
  %v83 = vpack.c.b16 %v77, %v74
  %vm90 = vcmask 261120
  %v92 = vsel %vm90, %v49, 0
  %94 = vmatprep.subr.bf16.mxu0 %v79
  %95 = vmatpush1.bf16.msra.mxu0 %v78
  %96 = vmatprep.subr.bf16.mxu0 %v82
  %97 = vmatpush1.bf16.msra.mxu0 %v81
  %98 = vmatprep.subr.bf16.mxu0 0
  %99 = vmatpush1.bf16.msra.mxu0 0
  %100 = vmatprep.subr.bf16.mxu0 0
  %101 = vmatpush1.bf16.msra.mxu0 0
  %102 = vmatprep.subr.bf16.mxu0 0
  %103 = vmatpush1.bf16.msra.mxu0 0
  %104 = vmatprep.subr.bf16.mxu0 0
  %105 = vmatpush1.bf16.msra.mxu0 0
  %106 = vmatprep.subr.bf16.mxu0 0
  %107 = vmatpush1.bf16.msra.mxu0 0
  %108 = vmatprep.subr.bf16.mxu0 0
  %109 = vmatpush1.bf16.msra.mxu0 0
  %110 = vmatprep.subr.bf16.mxu0 0
  %111 = vmatpush1.bf16.msra.mxu0 0
  %112 = vmatprep.subr.bf16.mxu0 0
  %113 = vmatpush1.bf16.msra.mxu0 0
  %114 = vmatprep.subr.bf16.mxu0 0
  %115 = vmatpush1.bf16.msra.mxu0 0
  %116 = vmatprep.subr.bf16.mxu0 0
  %117 = vmatpush1.bf16.msra.mxu0 0
  %118 = vmatprep.subr.bf16.mxu0 0
  %119 = vmatpush1.bf16.msra.mxu0 0
  %120 = vmatprep.subr.bf16.mxu0 0
  %121 = vmatpush1.bf16.msra.mxu0 0
  %122 = vmatprep.subr.bf16.mxu0 0
  %123 = vmatpush1.bf16.msra.mxu0 0
  %124 = vmatprep.subr.bf16.mxu0 0
  %125 = vmatpush1.bf16.msra.mxu0 0
  %126 = vmatprep.mubr.bf16.mxu0 0
  %127 = vmatmul.mubr.bf16.gmra.mrb[0].mxu0 %v92
  %v128 = vpop.f32.mrb[0].mxu0
  %v129 = vadd.f32 0.0, %v128
  %v130 = vpop.f32.mrb[0].mxu0
  %v131 = vadd.f32 0.0, %v130
  %v132 = vpop.f32.mrb[0].mxu0
  %v133 = vpop.f32.mrb[0].mxu0
  %134 = vdwg.mxu0
  %135 = vmatprep.subr.bf16.mxu0 0
  %136 = vmatpush1.bf16.msra.mxu0 %v80
  %137 = vmatprep.subr.bf16.mxu0 0
  %138 = vmatpush1.bf16.msra.mxu0 %v83
  %139 = vmatprep.subr.bf16.mxu0 0
  %140 = vmatpush1.bf16.msra.mxu0 0
  %141 = vmatprep.subr.bf16.mxu0 0
  %142 = vmatpush1.bf16.msra.mxu0 0
  %143 = vmatprep.subr.bf16.mxu0 0
  %144 = vmatpush1.bf16.msra.mxu0 0
  %145 = vmatprep.subr.bf16.mxu0 0
  %146 = vmatpush1.bf16.msra.mxu0 0
  %147 = vmatprep.subr.bf16.mxu0 0
  %148 = vmatpush1.bf16.msra.mxu0 0
  %149 = vmatprep.subr.bf16.mxu0 0
  %150 = vmatpush1.bf16.msra.mxu0 0
  %151 = vmatprep.subr.bf16.mxu0 0
  %152 = vmatpush1.bf16.msra.mxu0 0
  %153 = vmatprep.subr.bf16.mxu0 0
  %154 = vmatpush1.bf16.msra.mxu0 0
  %155 = vmatprep.subr.bf16.mxu0 0
  %156 = vmatpush1.bf16.msra.mxu0 0
  %157 = vmatprep.subr.bf16.mxu0 0
  %158 = vmatpush1.bf16.msra.mxu0 0
  %159 = vmatprep.subr.bf16.mxu0 0
  %160 = vmatpush1.bf16.msra.mxu0 0
  %161 = vmatprep.subr.bf16.mxu0 0
  %162 = vmatpush1.bf16.msra.mxu0 0
  %163 = vmatprep.subr.bf16.mxu0 0
  %164 = vmatpush1.bf16.msra.mxu0 0
  %165 = vmatprep.subr.bf16.mxu0 0
  %166 = vmatpush1.bf16.msra.mxu0 0
  %167 = vmatprep.mubr.bf16.mxu0 0
  %168 = vmatmul.mubr.bf16.gmra.mrb[0].mxu0 %v92
  %v169 = vpop.f32.mrb[0].mxu0
  %v170 = vadd.f32 0.0, %v169
  %v171 = vpop.f32.mrb[0].mxu0
  %v172 = vpop.f32.mrb[0].mxu0
  %v173 = vpop.f32.mrb[0].mxu0
  %174 = vdwg.mxu0
  %v175 = vld [vmem:[%s2] sm:$0x1]
  %v176 = vld [vmem:[%s3] sm:$0x1]
  %v177 = vld [vmem:[%s4] sm:$0xff]
  %v178 = vld [vmem:[%s4 + $0x8] sm:$0xff]
  %v179 = vld [vmem:[%s4 + $0x10] sm:$0xff]
  %v180 = vld [vmem:[%s4 + $0x18] sm:$0xff]
  %v181 = vld [vmem:[%s4 + $0x20] sm:$0xff]
  %v182 = vld [vmem:[%s4 + $0x28] sm:$0xff]
  %v183 = vld [vmem:[%s4 + $0x30] sm:$0xff]
  %v184 = vld [vmem:[%s4 + $0x38] sm:$0xff]
  %v185 = vld [vmem:[%s4 + $0x40] sm:$0xff]
  %v186 = vld [vmem:[%s4 + $0x48] sm:$0xff]
  %v187 = vld [vmem:[%s4 + $0x50] sm:$0xff]
  %v188 = vld [vmem:[%s4 + $0x58] sm:$0xff]
  %v189 = vld [vmem:[%s4 + $0x60] sm:$0xff]
  %v190 = vld [vmem:[%s4 + $0x68] sm:$0xff]
  %v191 = vld [vmem:[%s4 + $0x70] sm:$0xff]
  %v192 = vld [vmem:[%s4 + $0x78] sm:$0xff]
  %v193 = vld [vmem:[%s4 + $0x80] sm:$0xff]
  %v194 = vld [vmem:[%s4 + $0x88] sm:$0xff]
  %v195 = vld [vmem:[%s4 + $0x90] sm:$0xff]
  %v196 = vld [vmem:[%s4 + $0x98] sm:$0xff]
  %v197 = vld [vmem:[%s4 + $0xa0] sm:$0xff]
  %v198 = vld [vmem:[%s4 + $0xa8] sm:$0xff]
  %v199 = vld [vmem:[%s4 + $0xb0] sm:$0xff]
  %v200 = vld [vmem:[%s4 + $0xb8] sm:$0xff]
  %v201 = vld [vmem:[%s4 + $0xc0] sm:$0xff]
  %v202 = vld [vmem:[%s4 + $0xc8] sm:$0xff]
  %v203 = vld [vmem:[%s4 + $0xd0] sm:$0xff]
  %v204 = vld [vmem:[%s4 + $0xd8] sm:$0xff]
  %v205 = vld [vmem:[%s4 + $0xe0] sm:$0xff]
  %v206 = vld [vmem:[%s4 + $0xe8] sm:$0xff]
  %v207 = vld [vmem:[%s4 + $0xf0] sm:$0xff]
  %v208 = vld [vmem:[%s4 + $0xf8] sm:$0xff]
  %v209 = vld [vmem:[%s4 + $0x100] sm:$0xff]
  %v210 = vld [vmem:[%s4 + $0x108] sm:$0xff]
  %v211 = vld [vmem:[%s4 + $0x110] sm:$0xff]
  %v212 = vld [vmem:[%s4 + $0x118] sm:$0xff]
  %v213 = vld [vmem:[%s4 + $0x120] sm:$0xff]
  %v214 = vld [vmem:[%s4 + $0x128] sm:$0xff]
  %v215 = vld [vmem:[%s4 + $0x130] sm:$0xff]
  %v216 = vld [vmem:[%s4 + $0x138] sm:$0xff]
  %v217 = vld [vmem:[%s4 + $0x140] sm:$0xff]
  %v218 = vld [vmem:[%s4 + $0x148] sm:$0xff]
  %v219 = vld [vmem:[%s4 + $0x150] sm:$0xff]
  %v220 = vld [vmem:[%s4 + $0x158] sm:$0xff]
  %v221 = vld [vmem:[%s4 + $0x160] sm:$0xff]
  %v222 = vld [vmem:[%s4 + $0x168] sm:$0xff]
  %v223 = vld [vmem:[%s4 + $0x170] sm:$0xff]
  %v224 = vld [vmem:[%s4 + $0x178] sm:$0xff]
  %v225 = vld [vmem:[%s5] sm:$0xff]
  %v226 = vld [vmem:[%s5 + $0x8] sm:$0xff]
  %v227 = vld [vmem:[%s5 + $0x10] sm:$0xff]
  %v228 = vld [vmem:[%s5 + $0x18] sm:$0xff]
  %v229 = vld [vmem:[%s5 + $0x20] sm:$0xff]
  %v230 = vld [vmem:[%s5 + $0x28] sm:$0xff]
  %v231 = vrot.slane %v129, 4
  %v232 = vadd.f32 %v129, %v231
  %v233 = vrot.slane %v232, 2
  %v234 = vadd.f32 %v232, %v233
  %v235 = vrot.slane %v234, 1
  %v236 = vadd.f32 %v234, %v235
  %v237 = vrot.slane %v131, 4
  %v238 = vadd.f32 %v131, %v237
  %v239 = vrot.slane %v238, 2
  %v240 = vadd.f32 %v238, %v239
  %v241 = vrot.slane %v240, 1
  %v242 = vadd.f32 %v240, %v241
  %v243 = vrot.slane %v170, 4
  %v244 = vadd.f32 %v170, %v243
  %v245 = vrot.slane %v244, 2
  %v246 = vadd.f32 %v244, %v245
  %v247 = vrot.slane %v246, 1
  %v248 = vadd.f32 %v246, %v247
  %v249 = vmul.f32 %v129, %v129
  %v250 = vmul.f32 %v131, %v131
  %v251 = vmul.f32 %v170, %v170
  %v252 = vrot.slane %v249, 4
  %v253 = vadd.f32 %v249, %v252
  %v254 = vrot.slane %v253, 2
  %v255 = vadd.f32 %v253, %v254
  %v256 = vrot.slane %v255, 1
  %v257 = vadd.f32 %v255, %v256
  %v258 = vrot.slane %v250, 4
  %v259 = vadd.f32 %v250, %v258
  %v260 = vrot.slane %v259, 2
  %v261 = vadd.f32 %v259, %v260
  %v262 = vrot.slane %v261, 1
  %v263 = vadd.f32 %v261, %v262
  %v264 = vrot.slane %v251, 4
  %v265 = vadd.f32 %v251, %v264
  %v266 = vrot.slane %v265, 2
  %v267 = vadd.f32 %v265, %v266
  %v268 = vrot.slane %v267, 1
  %v269 = vadd.f32 %v267, %v268
  %vm270 = vcmask 1040384
  %v271 = vsel %vm270, %v236, %v257
  %v272 = vsel %vm270, %v242, %v263
  %v273 = vsel %vm270, %v248, %v269
  %274 = vmatprep.subr.mxu0 0.0
  %275 = vmatpush1.msra.mxu0 %v177
  %276 = vmatprep.subr.mxu0 0.0
  %277 = vmatpush1.msra.mxu0 %v178
  %278 = vmatprep.subr.mxu0 0.0
  %279 = vmatpush1.msra.mxu0 %v179
  %280 = vmatprep.subr.mxu0 0.0
  %281 = vmatpush1.msra.mxu0 %v180
  %282 = vmatprep.subr.mxu0 0.0
  %283 = vmatpush1.msra.mxu0 %v181
  %284 = vmatprep.subr.mxu0 0.0
  %285 = vmatpush1.msra.mxu0 %v182
  %286 = vmatprep.subr.mxu0 0.0
  %287 = vmatpush1.msra.mxu0 %v183
  %288 = vmatprep.subr.mxu0 0.0
  %289 = vmatpush1.msra.mxu0 %v184
  %290 = vmatprep.subr.mxu0 0.0
  %291 = vmatpush1.msra.mxu0 %v185
  %292 = vmatprep.subr.mxu0 0.0
  %293 = vmatpush1.msra.mxu0 %v186
  %294 = vmatprep.subr.mxu0 0.0
  %295 = vmatpush1.msra.mxu0 %v187
  %296 = vmatprep.subr.mxu0 0.0
  %297 = vmatpush1.msra.mxu0 %v188
  %298 = vmatprep.subr.mxu0 0.0
  %299 = vmatpush1.msra.mxu0 %v189
  %300 = vmatprep.subr.mxu0 0.0
  %301 = vmatpush1.msra.mxu0 %v190
  %302 = vmatprep.subr.mxu0 0.0
  %303 = vmatpush1.msra.mxu0 %v191
  %304 = vmatprep.subr.mxu0 0.0
  %305 = vmatpush1.msra.mxu0 %v192
  %306 = vmatprep.subr.mxu0 0.0
  %307 = vmatpush1.msra.mxu0 %v193
  %308 = vmatprep.subr.mxu0 0.0
  %309 = vmatpush1.msra.mxu0 %v194
  %310 = vmatprep.subr.mxu0 0.0
  %311 = vmatpush1.msra.mxu0 %v195
  %312 = vmatprep.subr.mxu0 0.0
  %313 = vmatpush1.msra.mxu0 %v196
  %314 = vmatprep.subr.mxu0 0.0
  %315 = vmatpush1.msra.mxu0 %v197
  %316 = vmatprep.subr.mxu0 0.0
  %317 = vmatpush1.msra.mxu0 %v198
  %318 = vmatprep.subr.mxu0 0.0
  %319 = vmatpush1.msra.mxu0 %v199
  %320 = vmatprep.subr.mxu0 0.0
  %321 = vmatpush1.msra.mxu0 %v200
  %322 = vmatprep.subr.mxu0 0.0
  %323 = vmatpush1.msra.mxu0 %v201
  %324 = vmatprep.subr.mxu0 0.0
  %325 = vmatpush1.msra.mxu0 %v202
  %326 = vmatprep.subr.mxu0 0.0
  %327 = vmatpush1.msra.mxu0 %v203
  %328 = vmatprep.subr.mxu0 0.0
  %329 = vmatpush1.msra.mxu0 %v204
  %330 = vmatprep.subr.mxu0 0.0
  %331 = vmatpush1.msra.mxu0 %v205
  %332 = vmatprep.subr.mxu0 0.0
  %333 = vmatpush1.msra.mxu0 %v206
  %334 = vmatprep.subr.mxu0 0.0
  %335 = vmatpush1.msra.mxu0 %v207
  %336 = vmatprep.subr.mxu0 0.0
  %337 = vmatpush1.msra.mxu0 %v208
  %338 = vmatprep.mubr.f32.mxu0 %v272
  %339 = vmatmul.mubr.f32.gmra.mrb[0].mxu0 %v271
  %v340 = vpop.f32.mrb[0].mxu0
  %v341 = vadd.f32 0.0, %v340
  %v342 = vpop.f32.mrb[0].mxu0
  %343 = vdwg.mxu0
  %344 = vmatprep.subr.mxu0 0.0
  %345 = vmatpush1.msra.mxu0 %v209
  %346 = vmatprep.subr.mxu0 0.0
  %347 = vmatpush1.msra.mxu0 %v210
  %348 = vmatprep.subr.mxu0 0.0
  %349 = vmatpush1.msra.mxu0 %v211
  %350 = vmatprep.subr.mxu0 0.0
  %351 = vmatpush1.msra.mxu0 %v212
  %352 = vmatprep.subr.mxu0 0.0
  %353 = vmatpush1.msra.mxu0 %v213
  %354 = vmatprep.subr.mxu0 0.0
  %355 = vmatpush1.msra.mxu0 %v214
  %356 = vmatprep.subr.mxu0 0.0
  %357 = vmatpush1.msra.mxu0 %v215
  %358 = vmatprep.subr.mxu0 0.0
  %359 = vmatpush1.msra.mxu0 %v216
  %360 = vmatprep.subr.mxu0 0.0
  %361 = vmatpush1.msra.mxu0 %v217
  %362 = vmatprep.subr.mxu0 0.0
  %363 = vmatpush1.msra.mxu0 %v218
  %364 = vmatprep.subr.mxu0 0.0
  %365 = vmatpush1.msra.mxu0 %v219
  %366 = vmatprep.subr.mxu0 0.0
  %367 = vmatpush1.msra.mxu0 %v220
  %368 = vmatprep.subr.mxu0 0.0
  %369 = vmatpush1.msra.mxu0 %v221
  %370 = vmatprep.subr.mxu0 0.0
  %371 = vmatpush1.msra.mxu0 %v222
  %372 = vmatprep.subr.mxu0 0.0
  %373 = vmatpush1.msra.mxu0 %v223
  %374 = vmatprep.subr.mxu0 0.0
  %375 = vmatpush1.msra.mxu0 %v224
  %376 = vmatprep.subr.mxu0 0.0
  %377 = vmatpush1.msra.mxu0 0.0
  %378 = vmatprep.subr.mxu0 0.0
  %379 = vmatpush1.msra.mxu0 0.0
  %380 = vmatprep.subr.mxu0 0.0
  %381 = vmatpush1.msra.mxu0 0.0
  %382 = vmatprep.subr.mxu0 0.0
  %383 = vmatpush1.msra.mxu0 0.0
  %384 = vmatprep.subr.mxu0 0.0
  %385 = vmatpush1.msra.mxu0 0.0
  %386 = vmatprep.subr.mxu0 0.0
  %387 = vmatpush1.msra.mxu0 0.0
  %388 = vmatprep.subr.mxu0 0.0
  %389 = vmatpush1.msra.mxu0 0.0
  %390 = vmatprep.subr.mxu0 0.0
  %391 = vmatpush1.msra.mxu0 0.0
  %392 = vmatprep.subr.mxu0 0.0
  %393 = vmatpush1.msra.mxu0 0.0
  %394 = vmatprep.subr.mxu0 0.0
  %395 = vmatpush1.msra.mxu0 0.0
  %396 = vmatprep.subr.mxu0 0.0
  %397 = vmatpush1.msra.mxu0 0.0
  %398 = vmatprep.subr.mxu0 0.0
  %399 = vmatpush1.msra.mxu0 0.0
  %400 = vmatprep.subr.mxu0 0.0
  %401 = vmatpush1.msra.mxu0 0.0
  %402 = vmatprep.subr.mxu0 0.0
  %403 = vmatpush1.msra.mxu0 0.0
  %404 = vmatprep.subr.mxu0 0.0
  %405 = vmatpush1.msra.mxu0 0.0
  %406 = vmatprep.subr.mxu0 0.0
  %407 = vmatpush1.msra.mxu0 0.0
  %408 = vmatprep.mubr.f32.mxu0 0.0
  %409 = vmatmul.mubr.f32.gmra.mrb[0].mxu0 %v273
  %v410 = vpop.f32.mrb[0].mxu0
  %v411 = vadd.f32 %v341, %v410
  %v412 = vpop.f32.mrb[0].mxu0
  %413 = vdwg.mxu0
  %v414 = vmul.f32 %v411, 0.03125
  %v415 = vmul.f32 %v414, %v414
  %v417 = vrot.slane %v415, 7
  %v419 = vsub.f32 %v414, %v417
  %v420 = vadd.f32 %v419, 1e-05
  %v421 = vrsqrt.pop %v420
  %v424 = vunpack.c.l.s4 1966171168
  %v425 = vunpack.c.0.s8 %v424
  %v426 = vlaneseq
  %v427 = vshrl.u32 %v426, 7
  %v428 = vsub.s32 %v425, %v427
  %v429 = vrot.slane %v421, %v428
  %v430 = vcombine.high %v429, %v429
  %v432 = vunpack.c.l.s4 1966171168
  %v433 = vunpack.c.0.s8 %v432
  %v434 = vlaneseq
  %v435 = vshrl.u32 %v434, 7
  %v436 = vsub.s32 %v433, %v435
  %v437 = vrot.slane %v430, %v436
  %v439 = vmul.f32 %v175, %v437
  %v440 = vmul.f32 %v414, %v439
  %v441 = vsub.f32 %v176, %v440
  %v443 = vlaneseq
  %v444 = vshrl.u32 %v443, 7
  %v445 = vsub.s32 0, %v444
  %v446 = vrot.slane %v441, %v445
  %v448 = vsel %vm270, %v439, %v446
  %vm449 = vcmask 130048
  %v451 = vsel %vm449, %v448, 0
  %453 = vmatprep.subr.mxu0 %v226
  %454 = vmatpush1.msra.mxu0 %v225
  %455 = vmatprep.subr.mxu0 %v229
  %456 = vmatpush1.msra.mxu0 %v228
  %457 = vmatprep.subr.mxu0 0.0
  %458 = vmatpush1.msra.mxu0 0.0
  %459 = vmatprep.subr.mxu0 0.0
  %460 = vmatpush1.msra.mxu0 0.0
  %461 = vmatprep.subr.mxu0 0.0
  %462 = vmatpush1.msra.mxu0 0.0
  %463 = vmatprep.subr.mxu0 0.0
  %464 = vmatpush1.msra.mxu0 0.0
  %465 = vmatprep.subr.mxu0 0.0
  %466 = vmatpush1.msra.mxu0 0.0
  %467 = vmatprep.subr.mxu0 0.0
  %468 = vmatpush1.msra.mxu0 0.0
  %469 = vmatprep.subr.mxu0 0.0
  %470 = vmatpush1.msra.mxu0 0.0
  %471 = vmatprep.subr.mxu0 0.0
  %472 = vmatpush1.msra.mxu0 0.0
  %473 = vmatprep.subr.mxu0 0.0
  %474 = vmatpush1.msra.mxu0 0.0
  %475 = vmatprep.subr.mxu0 0.0
  %476 = vmatpush1.msra.mxu0 0.0
  %477 = vmatprep.subr.mxu0 0.0
  %478 = vmatpush1.msra.mxu0 0.0
  %479 = vmatprep.subr.mxu0 0.0
  %480 = vmatpush1.msra.mxu0 0.0
  %481 = vmatprep.subr.mxu0 0.0
  %482 = vmatpush1.msra.mxu0 0.0
  %483 = vmatprep.subr.mxu0 0.0
  %484 = vmatpush1.msra.mxu0 0.0
  %485 = vmatprep.subr.mxu0 0.0
  %486 = vmatpush1.msra.mxu0 0.0
  %487 = vmatprep.subr.mxu0 0.0
  %488 = vmatpush1.msra.mxu0 0.0
  %489 = vmatprep.subr.mxu0 0.0
  %490 = vmatpush1.msra.mxu0 0.0
  %491 = vmatprep.subr.mxu0 0.0
  %492 = vmatpush1.msra.mxu0 0.0
  %493 = vmatprep.subr.mxu0 0.0
  %494 = vmatpush1.msra.mxu0 0.0
  %495 = vmatprep.subr.mxu0 0.0
  %496 = vmatpush1.msra.mxu0 0.0
  %497 = vmatprep.subr.mxu0 0.0
  %498 = vmatpush1.msra.mxu0 0.0
  %499 = vmatprep.subr.mxu0 0.0
  %500 = vmatpush1.msra.mxu0 0.0
  %501 = vmatprep.subr.mxu0 0.0
  %502 = vmatpush1.msra.mxu0 0.0
  %503 = vmatprep.subr.mxu0 0.0
  %504 = vmatpush1.msra.mxu0 0.0
  %505 = vmatprep.subr.mxu0 0.0
  %506 = vmatpush1.msra.mxu0 0.0
  %507 = vmatprep.subr.mxu0 0.0
  %508 = vmatpush1.msra.mxu0 0.0
  %509 = vmatprep.subr.mxu0 0.0
  %510 = vmatpush1.msra.mxu0 0.0
  %511 = vmatprep.subr.mxu0 0.0
  %512 = vmatpush1.msra.mxu0 0.0
  %513 = vmatprep.subr.mxu0 0.0
  %514 = vmatpush1.msra.mxu0 0.0
  %515 = vmatprep.subr.mxu0 0.0
  %516 = vmatpush1.msra.mxu0 0.0
  %517 = vmatprep.mubr.f32.mxu0 0.0
  %518 = vmatmul.mubr.f32.gmra.mrb[0].mxu0 %v451
  %v519 = vpop.f32.mrb[0].mxu0
  %v520 = vadd.f32 0.0, %v519
  %v521 = vpop.f32.mrb[0].mxu0
  %v522 = vadd.f32 0.0, %v521
  %523 = vdwg.mxu0
  %524 = vmatprep.subr.mxu0 0.0
  %525 = vmatpush1.msra.mxu0 %v227
  %526 = vmatprep.subr.mxu0 0.0
  %527 = vmatpush1.msra.mxu0 %v230
  %528 = vmatprep.subr.mxu0 0.0
  %529 = vmatpush1.msra.mxu0 0.0
  %530 = vmatprep.subr.mxu0 0.0
  %531 = vmatpush1.msra.mxu0 0.0
  %532 = vmatprep.subr.mxu0 0.0
  %533 = vmatpush1.msra.mxu0 0.0
  %534 = vmatprep.subr.mxu0 0.0
  %535 = vmatpush1.msra.mxu0 0.0
  %536 = vmatprep.subr.mxu0 0.0
  %537 = vmatpush1.msra.mxu0 0.0
  %538 = vmatprep.subr.mxu0 0.0
  %539 = vmatpush1.msra.mxu0 0.0
  %540 = vmatprep.subr.mxu0 0.0
  %541 = vmatpush1.msra.mxu0 0.0
  %542 = vmatprep.subr.mxu0 0.0
  %543 = vmatpush1.msra.mxu0 0.0
  %544 = vmatprep.subr.mxu0 0.0
  %545 = vmatpush1.msra.mxu0 0.0
  %546 = vmatprep.subr.mxu0 0.0
  %547 = vmatpush1.msra.mxu0 0.0
  %548 = vmatprep.subr.mxu0 0.0
  %549 = vmatpush1.msra.mxu0 0.0
  %550 = vmatprep.subr.mxu0 0.0
  %551 = vmatpush1.msra.mxu0 0.0
  %552 = vmatprep.subr.mxu0 0.0
  %553 = vmatpush1.msra.mxu0 0.0
  %554 = vmatprep.subr.mxu0 0.0
  %555 = vmatpush1.msra.mxu0 0.0
  %556 = vmatprep.subr.mxu0 0.0
  %557 = vmatpush1.msra.mxu0 0.0
  %558 = vmatprep.subr.mxu0 0.0
  %559 = vmatpush1.msra.mxu0 0.0
  %560 = vmatprep.subr.mxu0 0.0
  %561 = vmatpush1.msra.mxu0 0.0
  %562 = vmatprep.subr.mxu0 0.0
  %563 = vmatpush1.msra.mxu0 0.0
  %564 = vmatprep.subr.mxu0 0.0
  %565 = vmatpush1.msra.mxu0 0.0
  %566 = vmatprep.subr.mxu0 0.0
  %567 = vmatpush1.msra.mxu0 0.0
  %568 = vmatprep.subr.mxu0 0.0
  %569 = vmatpush1.msra.mxu0 0.0
  %570 = vmatprep.subr.mxu0 0.0
  %571 = vmatpush1.msra.mxu0 0.0
  %572 = vmatprep.subr.mxu0 0.0
  %573 = vmatpush1.msra.mxu0 0.0
  %574 = vmatprep.subr.mxu0 0.0
  %575 = vmatpush1.msra.mxu0 0.0
  %576 = vmatprep.subr.mxu0 0.0
  %577 = vmatpush1.msra.mxu0 0.0
  %578 = vmatprep.subr.mxu0 0.0
  %579 = vmatpush1.msra.mxu0 0.0
  %580 = vmatprep.subr.mxu0 0.0
  %581 = vmatpush1.msra.mxu0 0.0
  %582 = vmatprep.subr.mxu0 0.0
  %583 = vmatpush1.msra.mxu0 0.0
  %584 = vmatprep.subr.mxu0 0.0
  %585 = vmatpush1.msra.mxu0 0.0
  %586 = vmatprep.subr.mxu0 0.0
  %587 = vmatpush1.msra.mxu0 0.0
  %588 = vmatprep.mubr.f32.mxu0 0.0
  %589 = vmatmul.mubr.f32.gmra.mrb[0].mxu0 %v451
  %v590 = vpop.f32.mrb[0].mxu0
  %v591 = vadd.f32 0.0, %v590
  %v592 = vpop.f32.mrb[0].mxu0
  %593 = vdwg.mxu0
  %v594 = vlaneseq
  %v595 = vshrl.u32 %v594, 7
  %v596 = vsub.s32 0, %v595
  %v597 = vrot.slane %v520, %v596
  %v598 = vlaneseq
  %v599 = vshrl.u32 %v598, 7
  %v600 = vsub.s32 0, %v599
  %v601 = vrot.slane %v522, %v600
  %v602 = vlaneseq
  %v603 = vshrl.u32 %v602, 7
  %v604 = vsub.s32 0, %v603
  %v605 = vrot.slane %v591, %v604
  %v606 = vmul.f32 %v129, %v597
  %v607 = vmul.f32 %v131, %v601
  %v608 = vmul.f32 %v170, %v605
  %v609 = vlaneseq
  %v610 = vshrl.u32 %v609, 7
  %v611 = vsub.s32 1, %v610
  %v612 = vrot.slane %v520, %v611
  %v613 = vlaneseq
  %v614 = vshrl.u32 %v613, 7
  %v615 = vsub.s32 1, %v614
  %v616 = vrot.slane %v522, %v615
  %v617 = vlaneseq
  %v618 = vshrl.u32 %v617, 7
  %v619 = vsub.s32 1, %v618
  %v620 = vrot.slane %v591, %v619
  %v621 = vadd.f32 %v606, %v612
  %v622 = vadd.f32 %v607, %v616
  %v623 = vadd.f32 %v608, %v620
  %vm624 = vcmp.gt.f32.partialorder %v621, 0.0
  %vm625 = vcmp.gt.f32.partialorder %v622, 0.0
  %vm626 = vcmp.gt.f32.partialorder %v623, 0.0
  %v627 = vmul.f32 %v621, 1.442695
  %v628 = vpow.pop %v627
  %v629 = vmul.f32 %v622, 1.442695
  %v630 = vpow.pop %v629
  %v631 = vmul.f32 %v623, 1.442695
  %v632 = vpow.pop %v631
  %v633 = vsub.f32 %v628, 1.0
  %v634 = vsub.f32 %v630, 1.0
  %v635 = vsub.f32 %v632, 1.0
  %v636 = vmul.f32 %v633, 1.6732632
  %v637 = vmul.f32 %v634, 1.6732632
  %v638 = vmul.f32 %v635, 1.6732632
  %v639 = vsel %vm624, %v621, %v636
  %v640 = vsel %vm625, %v622, %v637
  %v641 = vsel %vm626, %v623, %v638
  %v642 = vmul.f32 %v639, 1.050701
  %v643 = vmul.f32 %v640, 1.050701
  %v644 = vmul.f32 %v641, 1.050701
  %v645 = vld [vmem:[%s6] sm:$0xff]
  %v646 = vld [vmem:[%s6 + $0x8] sm:$0xff]
  %v647 = vld [vmem:[%s6 + $0x10] sm:$0xff]
  %v648 = vmul.f32 %v642, %v645
  %v649 = vmul.f32 %v643, %v646
  %v650 = vmul.f32 %v644, %v647
  %vm651 = vcmask 785408
  %652 = vst.msk [vmem:[#allocation2] sm:$0xff] %vm651, 0.0
  %653 = vst.msk [vmem:[#allocation2 + $0x28] sm:$0xff] %vm651, 0.0
  %654 = vst.msk [vmem:[#allocation2 + $0x8] sm:$0xff] %vm651, %v648
  %657 = vrot.lane.b32.xlu0 %v648, 32
  %v658 = vpop.permute.xlu0 %657
  %659 = vrot.lane.b32.xlu0 %v649, 32
  %v660 = vpop.permute.xlu0 %659
  %v661 = vsel %vm90, %v658, %v660
  %663 = vst.msk [vmem:[#allocation2 + $0x10] sm:$0xff] %vm651, %v661
  %665 = vrot.lane.b32.xlu0 %v649, 64
  %v666 = vpop.permute.xlu0 %665
  %667 = vrot.lane.b32.xlu0 %v650, 64
  %v668 = vpop.permute.xlu0 %667
  %vm669 = vcmask 523264
  %v670 = vsel %vm669, %v666, %v668
  %672 = vst.msk [vmem:[#allocation2 + $0x18] sm:$0xff] %vm651, %v670
  %673 = vrot.lane.b32.xlu0 %v650, 96
  %v674 = vpop.permute.xlu0 %673
  %676 = vst.msk [vmem:[#allocation2 + $0x20] sm:$0xff] %vm651, %v674
  %v677 = vld [vmem:[#allocation2] sm:$0xff]
  %v678 = vld [vmem:[#allocation2 + $0x8] sm:$0xff]
  %v679 = vld [vmem:[#allocation2 + $0x10] sm:$0xff]
  %v680 = vld [vmem:[#allocation2 + $0x18] sm:$0xff]
  %v681 = vld [vmem:[#allocation2 + $0x20] sm:$0xff]
  %v682 = vld [vmem:[#allocation2 + $0x28] sm:$0xff]
  %v683 = vpack.c.bf16 %v678, %v677
  %v684 = vpack.c.bf16 %v680, %v679
  %v685 = vpack.c.bf16 %v682, %v681
  %v686 = vld [vmem:[%s7] sm:$0xff]
  %v687 = vld [vmem:[%s7 + $0x8] sm:$0xff]
  %v688 = vld [vmem:[%s7 + $0x10] sm:$0xff]
  %v689 = vld [vmem:[%s7 + $0x18] sm:$0xff]
  %v690 = vld [vmem:[%s7 + $0x20] sm:$0xff]
  %v691 = vld [vmem:[%s7 + $0x28] sm:$0xff]
  %v692 = vld [vmem:[%s7 + $0x30] sm:$0xff]
  %v693 = vld [vmem:[%s7 + $0x38] sm:$0xff]
  %v694 = vld [vmem:[%s7 + $0x40] sm:$0xff]
  %v695 = vld [vmem:[%s7 + $0x48] sm:$0xff]
  %v696 = vld [vmem:[%s7 + $0x50] sm:$0xff]
  %v697 = vld [vmem:[%s7 + $0x58] sm:$0xff]
  %s698 = scalar_lea.vmem %s7, 96
  %v699 = vld [vmem:[%s698] sm:$0xff]
  %v700 = vld [vmem:[%s698 + $0x8] sm:$0xff]
  %v701 = vld [vmem:[%s698 + $0x10] sm:$0xff]
  %v702 = vld [vmem:[%s698 + $0x18] sm:$0xff]
  %v703 = vld [vmem:[%s698 + $0x20] sm:$0xff]
  %v704 = vld [vmem:[%s698 + $0x28] sm:$0xff]
  %v705 = vld [vmem:[%s698 + $0x30] sm:$0xff]
  %v706 = vld [vmem:[%s698 + $0x38] sm:$0xff]
  %v707 = vld [vmem:[%s698 + $0x40] sm:$0xff]
  %v708 = vld [vmem:[%s698 + $0x48] sm:$0xff]
  %v709 = vld [vmem:[%s698 + $0x50] sm:$0xff]
  %v710 = vld [vmem:[%s698 + $0x58] sm:$0xff]
  %vm714 = vcmask 1043456
  %v715 = vrot.slane %v683, 4
  %v716 = vrot.slane %v684, 4
  %v717 = vsel %vm714, %v715, %v716
  %v718 = vrot.slane %v685, 4
  %v719 = vsel %vm714, %v716, %v718
  %v732 = vunpack.c.l.b16 %v699
  %v733 = vunpack.c.h.b16 %v699
  %v734 = vunpack.c.l.b16 %v700
  %v735 = vunpack.c.h.b16 %v700
  %v736 = vunpack.c.l.b16 %v701
  %v737 = vunpack.c.h.b16 %v701
  %v738 = vunpack.c.l.b16 %v702
  %v739 = vunpack.c.h.b16 %v702
  %v740 = vunpack.c.l.b16 %v703
  %v741 = vunpack.c.h.b16 %v703
  %v742 = vunpack.c.l.b16 %v704
  %v743 = vunpack.c.h.b16 %v704
  %v744 = vunpack.c.l.b16 %v705
  %v745 = vunpack.c.h.b16 %v705
  %v746 = vunpack.c.l.b16 %v706
  %v747 = vunpack.c.h.b16 %v706
  %v748 = vunpack.c.l.b16 %v707
  %v749 = vunpack.c.h.b16 %v707
  %v750 = vunpack.c.l.b16 %v708
  %v751 = vunpack.c.h.b16 %v708
  %v752 = vunpack.c.l.b16 %v709
  %v753 = vunpack.c.h.b16 %v709
  %v754 = vunpack.c.l.b16 %v710
  %v755 = vunpack.c.h.b16 %v710
  %v756 = vpack.c.b16 %v734, %v732
  %v757 = vpack.c.b16 %v735, %v733
  %v758 = vpack.c.b16 %v738, %v736
  %v759 = vpack.c.b16 %v739, %v737
  %v760 = vpack.c.b16 %v742, %v740
  %v761 = vpack.c.b16 %v743, %v741
  %v762 = vpack.c.b16 %v746, %v744
  %v763 = vpack.c.b16 %v747, %v745
  %v764 = vpack.c.b16 %v750, %v748
  %v765 = vpack.c.b16 %v751, %v749
  %v766 = vpack.c.b16 %v754, %v752
  %v767 = vpack.c.b16 %v755, %v753
  %v781 = vsel %vm651, %v717, 0
  %v784 = vsel %vm651, %v719, 0
  %786 = vmatprep.subr.bf16.mxu0 %v757
  %787 = vmatpush1.bf16.msra.mxu0 %v756
  %788 = vmatprep.subr.bf16.mxu0 %v759
  %789 = vmatpush1.bf16.msra.mxu0 %v758
  %790 = vmatprep.subr.bf16.mxu0 %v761
  %791 = vmatpush1.bf16.msra.mxu0 %v760
  %792 = vmatprep.subr.bf16.mxu0 %v763
  %793 = vmatpush1.bf16.msra.mxu0 %v762
  %794 = vmatprep.subr.bf16.mxu0 %v765
  %795 = vmatpush1.bf16.msra.mxu0 %v764
  %796 = vmatprep.subr.bf16.mxu0 %v767
  %797 = vmatpush1.bf16.msra.mxu0 %v766
  %798 = vmatprep.subr.bf16.mxu0 0
  %799 = vmatpush1.bf16.msra.mxu0 0
  %800 = vmatprep.subr.bf16.mxu0 0
  %801 = vmatpush1.bf16.msra.mxu0 0
  %802 = vmatprep.subr.bf16.mxu0 0
  %803 = vmatpush1.bf16.msra.mxu0 0
  %804 = vmatprep.subr.bf16.mxu0 0
  %805 = vmatpush1.bf16.msra.mxu0 0
  %806 = vmatprep.subr.bf16.mxu0 0
  %807 = vmatpush1.bf16.msra.mxu0 0
  %808 = vmatprep.subr.bf16.mxu0 0
  %809 = vmatpush1.bf16.msra.mxu0 0
  %810 = vmatprep.subr.bf16.mxu0 0
  %811 = vmatpush1.bf16.msra.mxu0 0
  %812 = vmatprep.subr.bf16.mxu0 0
  %813 = vmatpush1.bf16.msra.mxu0 0
  %814 = vmatprep.subr.bf16.mxu0 0
  %815 = vmatpush1.bf16.msra.mxu0 0
  %816 = vmatprep.subr.bf16.mxu0 0
  %817 = vmatpush1.bf16.msra.mxu0 0
  %818 = vmatprep.mubr.bf16.mxu0 0
  %819 = vmatmul.mubr.bf16.gmra.mrb[0].mxu0 %v781
  %v820 = vpop.f32.mrb[0].mxu0
  %v821 = vadd.f32 0.0, %v820
  %v822 = vpop.f32.mrb[0].mxu0
  %v823 = vadd.f32 0.0, %v822
  %v824 = vpop.f32.mrb[0].mxu0
  %v825 = vadd.f32 0.0, %v824
  %v826 = vpop.f32.mrb[0].mxu0
  %v827 = vadd.f32 0.0, %v826
  %828 = vmatprep.mubr.bf16.mxu0 0
  %829 = vmatmul.mubr.bf16.gmra.mrb[0].mxu0 %v784
  %v830 = vpop.f32.mrb[0].mxu0
  %v831 = vadd.f32 0.0, %v830
  %v832 = vpop.f32.mrb[0].mxu0
  %v833 = vadd.f32 0.0, %v832
  %v834 = vpop.f32.mrb[0].mxu0
  %v835 = vadd.f32 0.0, %v834
  %v836 = vpop.f32.mrb[0].mxu0
  %v837 = vadd.f32 0.0, %v836
  %838 = vdwg.mxu0
  %v851 = vunpack.c.l.b16 %v686
  %v852 = vunpack.c.h.b16 %v686
  %v853 = vunpack.c.l.b16 %v687
  %v854 = vunpack.c.h.b16 %v687
  %v855 = vunpack.c.l.b16 %v688
  %v856 = vunpack.c.h.b16 %v688
  %v857 = vunpack.c.l.b16 %v689
  %v858 = vunpack.c.h.b16 %v689
  %v859 = vunpack.c.l.b16 %v690
  %v860 = vunpack.c.h.b16 %v690
  %v861 = vunpack.c.l.b16 %v691
  %v862 = vunpack.c.h.b16 %v691
  %v863 = vunpack.c.l.b16 %v692
  %v864 = vunpack.c.h.b16 %v692
  %v865 = vunpack.c.l.b16 %v693
  %v866 = vunpack.c.h.b16 %v693
  %v867 = vunpack.c.l.b16 %v694
  %v868 = vunpack.c.h.b16 %v694
  %v869 = vunpack.c.l.b16 %v695
  %v870 = vunpack.c.h.b16 %v695
  %v871 = vunpack.c.l.b16 %v696
  %v872 = vunpack.c.h.b16 %v696
  %v873 = vunpack.c.l.b16 %v697
  %v874 = vunpack.c.h.b16 %v697
  %v875 = vpack.c.b16 %v853, %v851
  %v876 = vpack.c.b16 %v854, %v852
  %v877 = vpack.c.b16 %v857, %v855
  %v878 = vpack.c.b16 %v858, %v856
  %v879 = vpack.c.b16 %v861, %v859
  %v880 = vpack.c.b16 %v862, %v860
  %v881 = vpack.c.b16 %v865, %v863
  %v882 = vpack.c.b16 %v866, %v864
  %v883 = vpack.c.b16 %v869, %v867
  %v884 = vpack.c.b16 %v870, %v868
  %v885 = vpack.c.b16 %v873, %v871
  %v886 = vpack.c.b16 %v874, %v872
  %v900 = vsel %vm651, %v683, 0
  %v903 = vsel %vm651, %v684, 0
  %905 = vmatprep.subr.bf16.mxu0 %v876
  %906 = vmatpush1.bf16.msra.mxu0 %v875
  %907 = vmatprep.subr.bf16.mxu0 %v878
  %908 = vmatpush1.bf16.msra.mxu0 %v877
  %909 = vmatprep.subr.bf16.mxu0 %v880
  %910 = vmatpush1.bf16.msra.mxu0 %v879
  %911 = vmatprep.subr.bf16.mxu0 %v882
  %912 = vmatpush1.bf16.msra.mxu0 %v881
  %913 = vmatprep.subr.bf16.mxu0 %v884
  %914 = vmatpush1.bf16.msra.mxu0 %v883
  %915 = vmatprep.subr.bf16.mxu0 %v886
  %916 = vmatpush1.bf16.msra.mxu0 %v885
  %917 = vmatprep.subr.bf16.mxu0 0
  %918 = vmatpush1.bf16.msra.mxu0 0
  %919 = vmatprep.subr.bf16.mxu0 0
  %920 = vmatpush1.bf16.msra.mxu0 0
  %921 = vmatprep.subr.bf16.mxu0 0
  %922 = vmatpush1.bf16.msra.mxu0 0
  %923 = vmatprep.subr.bf16.mxu0 0
  %924 = vmatpush1.bf16.msra.mxu0 0
  %925 = vmatprep.subr.bf16.mxu0 0
  %926 = vmatpush1.bf16.msra.mxu0 0
  %927 = vmatprep.subr.bf16.mxu0 0
  %928 = vmatpush1.bf16.msra.mxu0 0
  %929 = vmatprep.subr.bf16.mxu0 0
  %930 = vmatpush1.bf16.msra.mxu0 0
  %931 = vmatprep.subr.bf16.mxu0 0
  %932 = vmatpush1.bf16.msra.mxu0 0
  %933 = vmatprep.subr.bf16.mxu0 0
  %934 = vmatpush1.bf16.msra.mxu0 0
  %935 = vmatprep.subr.bf16.mxu0 0
  %936 = vmatpush1.bf16.msra.mxu0 0
  %937 = vmatprep.mubr.bf16.mxu0 0
  %938 = vmatmul.mubr.bf16.gmra.mrb[0].mxu0 %v900
  %v939 = vpop.f32.mrb[0].mxu0
  %v940 = vadd.f32 %v821, %v939
  %v941 = vpop.f32.mrb[0].mxu0
  %v942 = vadd.f32 %v823, %v941
  %v943 = vpop.f32.mrb[0].mxu0
  %v944 = vadd.f32 %v825, %v943
  %v945 = vpop.f32.mrb[0].mxu0
  %v946 = vadd.f32 %v827, %v945
  %947 = vmatprep.mubr.bf16.mxu0 0
  %948 = vmatmul.mubr.bf16.gmra.mrb[0].mxu0 %v903
  %v949 = vpop.f32.mrb[0].mxu0
  %v950 = vadd.f32 %v831, %v949
  %v951 = vpop.f32.mrb[0].mxu0
  %v952 = vadd.f32 %v833, %v951
  %v953 = vpop.f32.mrb[0].mxu0
  %v954 = vadd.f32 %v835, %v953
  %v955 = vpop.f32.mrb[0].mxu0
  %v956 = vadd.f32 %v837, %v955
  %957 = vdwg.mxu0
  %s958 = scalar_lea.vmem %s7, 192
  %v959 = vld [vmem:[%s958] sm:$0xff]
  %v960 = vld [vmem:[%s958 + $0x8] sm:$0xff]
  %v961 = vld [vmem:[%s958 + $0x10] sm:$0xff]
  %v962 = vld [vmem:[%s958 + $0x18] sm:$0xff]
  %v963 = vld [vmem:[%s958 + $0x20] sm:$0xff]
  %v964 = vld [vmem:[%s958 + $0x28] sm:$0xff]
  %v965 = vld [vmem:[%s958 + $0x30] sm:$0xff]
  %v966 = vld [vmem:[%s958 + $0x38] sm:$0xff]
  %v967 = vld [vmem:[%s958 + $0x40] sm:$0xff]
  %v968 = vld [vmem:[%s958 + $0x48] sm:$0xff]
  %v969 = vld [vmem:[%s958 + $0x50] sm:$0xff]
  %v970 = vld [vmem:[%s958 + $0x58] sm:$0xff]
  %v983 = vunpack.c.l.b16 %v959
  %v984 = vunpack.c.h.b16 %v959
  %v985 = vunpack.c.l.b16 %v960
  %v986 = vunpack.c.h.b16 %v960
  %v987 = vunpack.c.l.b16 %v961
  %v988 = vunpack.c.h.b16 %v961
  %v989 = vunpack.c.l.b16 %v962
  %v990 = vunpack.c.h.b16 %v962
  %v991 = vunpack.c.l.b16 %v963
  %v992 = vunpack.c.h.b16 %v963
  %v993 = vunpack.c.l.b16 %v964
  %v994 = vunpack.c.h.b16 %v964
  %v995 = vunpack.c.l.b16 %v965
  %v996 = vunpack.c.h.b16 %v965
  %v997 = vunpack.c.l.b16 %v966
  %v998 = vunpack.c.h.b16 %v966
  %v999 = vunpack.c.l.b16 %v967
  %v1000 = vunpack.c.h.b16 %v967
  %v1001 = vunpack.c.l.b16 %v968
  %v1002 = vunpack.c.h.b16 %v968
  %v1003 = vunpack.c.l.b16 %v969
  %v1004 = vunpack.c.h.b16 %v969
  %v1005 = vunpack.c.l.b16 %v970
  %v1006 = vunpack.c.h.b16 %v970
  %v1007 = vpack.c.b16 %v985, %v983
  %v1008 = vpack.c.b16 %v986, %v984
  %v1009 = vpack.c.b16 %v989, %v987
  %v1010 = vpack.c.b16 %v990, %v988
  %v1011 = vpack.c.b16 %v993, %v991
  %v1012 = vpack.c.b16 %v994, %v992
  %v1013 = vpack.c.b16 %v997, %v995
  %v1014 = vpack.c.b16 %v998, %v996
  %v1015 = vpack.c.b16 %v1001, %v999
  %v1016 = vpack.c.b16 %v1002, %v1000
  %v1017 = vpack.c.b16 %v1005, %v1003
  %v1018 = vpack.c.b16 %v1006, %v1004
  %v1032 = vsel %vm651, %v685, 0
  %1034 = vmatprep.subr.bf16.mxu0 %v1008
  %1035 = vmatpush1.bf16.msra.mxu0 %v1007
  %1036 = vmatprep.subr.bf16.mxu0 %v1010
  %1037 = vmatpush1.bf16.msra.mxu0 %v1009
  %1038 = vmatprep.subr.bf16.mxu0 %v1012
  %1039 = vmatpush1.bf16.msra.mxu0 %v1011
  %1040 = vmatprep.subr.bf16.mxu0 %v1014
  %1041 = vmatpush1.bf16.msra.mxu0 %v1013
  %1042 = vmatprep.subr.bf16.mxu0 %v1016
  %1043 = vmatpush1.bf16.msra.mxu0 %v1015
  %1044 = vmatprep.subr.bf16.mxu0 %v1018
  %1045 = vmatpush1.bf16.msra.mxu0 %v1017
  %1046 = vmatprep.subr.bf16.mxu0 0
  %1047 = vmatpush1.bf16.msra.mxu0 0
  %1048 = vmatprep.subr.bf16.mxu0 0
  %1049 = vmatpush1.bf16.msra.mxu0 0
  %1050 = vmatprep.subr.bf16.mxu0 0
  %1051 = vmatpush1.bf16.msra.mxu0 0
  %1052 = vmatprep.subr.bf16.mxu0 0
  %1053 = vmatpush1.bf16.msra.mxu0 0
  %1054 = vmatprep.subr.bf16.mxu0 0
  %1055 = vmatpush1.bf16.msra.mxu0 0
  %1056 = vmatprep.subr.bf16.mxu0 0
  %1057 = vmatpush1.bf16.msra.mxu0 0
  %1058 = vmatprep.subr.bf16.mxu0 0
  %1059 = vmatpush1.bf16.msra.mxu0 0
  %1060 = vmatprep.subr.bf16.mxu0 0
  %1061 = vmatpush1.bf16.msra.mxu0 0
  %1062 = vmatprep.subr.bf16.mxu0 0
  %1063 = vmatpush1.bf16.msra.mxu0 0
  %1064 = vmatprep.subr.bf16.mxu0 0
  %1065 = vmatpush1.bf16.msra.mxu0 0
  %1066 = vmatprep.mubr.bf16.mxu0 0
  %1067 = vmatmul.mubr.bf16.gmra.mrb[0].mxu0 %v903
  %v1068 = vpop.f32.mrb[0].mxu0
  %v1069 = vadd.f32 0.0, %v1068
  %v1070 = vpop.f32.mrb[0].mxu0
  %v1071 = vadd.f32 0.0, %v1070
  %v1072 = vpop.f32.mrb[0].mxu0
  %v1073 = vadd.f32 0.0, %v1072
  %v1074 = vpop.f32.mrb[0].mxu0
  %v1075 = vadd.f32 0.0, %v1074
  %1076 = vmatprep.mubr.bf16.mxu0 0
  %1077 = vmatmul.mubr.bf16.gmra.mrb[0].mxu0 %v1032
  %v1078 = vpop.f32.mrb[0].mxu0
  %v1079 = vadd.f32 0.0, %v1078
  %v1080 = vpop.f32.mrb[0].mxu0
  %v1081 = vadd.f32 0.0, %v1080
  %v1082 = vpop.f32.mrb[0].mxu0
  %v1083 = vadd.f32 0.0, %v1082
  %v1084 = vpop.f32.mrb[0].mxu0
  %v1085 = vadd.f32 0.0, %v1084
  %1086 = vdwg.mxu0
  %v1087 = vadd.f32 %v940, %v1069
  %v1088 = vadd.f32 %v942, %v1071
  %v1089 = vadd.f32 %v944, %v1073
  %v1090 = vadd.f32 %v946, %v1075
  %v1091 = vadd.f32 %v950, %v1079
  %v1092 = vadd.f32 %v952, %v1081
  %v1093 = vadd.f32 %v954, %v1083
  %v1094 = vadd.f32 %v956, %v1085
  %v1095 = vld [vmem:[%s8] sm:$0x1]
  %v1096 = vld [vmem:[%s9] sm:$0x1]
  %v1097 = vld [vmem:[%s10] sm:$0xff]
  %v1098 = vld [vmem:[%s10 + $0x8] sm:$0xff]
  %v1099 = vld [vmem:[%s10 + $0x10] sm:$0xff]
  %v1100 = vld [vmem:[%s10 + $0x18] sm:$0xff]
  %v1101 = vld [vmem:[%s10 + $0x20] sm:$0xff]
  %v1102 = vld [vmem:[%s10 + $0x28] sm:$0xff]
  %v1103 = vld [vmem:[%s10 + $0x30] sm:$0xff]
  %v1104 = vld [vmem:[%s10 + $0x38] sm:$0xff]
  %v1105 = vld [vmem:[%s10 + $0x40] sm:$0xff]
  %v1106 = vld [vmem:[%s10 + $0x48] sm:$0xff]
  %v1107 = vld [vmem:[%s10 + $0x50] sm:$0xff]
  %v1108 = vld [vmem:[%s10 + $0x58] sm:$0xff]
  %v1109 = vld [vmem:[%s10 + $0x60] sm:$0xff]
  %v1110 = vld [vmem:[%s10 + $0x68] sm:$0xff]
  %v1111 = vld [vmem:[%s10 + $0x70] sm:$0xff]
  %v1112 = vld [vmem:[%s10 + $0x78] sm:$0xff]
  %v1113 = vld [vmem:[%s10 + $0x80] sm:$0xff]
  %v1114 = vld [vmem:[%s10 + $0x88] sm:$0xff]
  %v1115 = vld [vmem:[%s10 + $0x90] sm:$0xff]
  %v1116 = vld [vmem:[%s10 + $0x98] sm:$0xff]
  %v1117 = vld [vmem:[%s11] sm:$0xff]
  %v1118 = vld [vmem:[%s11 + $0x8] sm:$0xff]
  %v1119 = vadd.f32 %v1087, %v1089
  %v1120 = vadd.f32 %v1119, %v1091
  %v1121 = vadd.f32 %v1120, %v1093
  %v1122 = vrot.slane %v1121, 4
  %v1123 = vadd.f32 %v1121, %v1122
  %v1124 = vrot.slane %v1123, 2
  %v1125 = vadd.f32 %v1123, %v1124
  %v1126 = vrot.slane %v1125, 1
  %v1127 = vadd.f32 %v1125, %v1126
  %v1128 = vsel %vm90, %v1088, 0.0
  %v1129 = vsel %vm90, %v1090, 0.0
  %v1130 = vadd.f32 %v1128, %v1129
  %v1131 = vsel %vm90, %v1092, 0.0
  %v1132 = vadd.f32 %v1130, %v1131
  %v1133 = vsel %vm90, %v1094, 0.0
  %v1134 = vadd.f32 %v1132, %v1133
  %v1135 = vrot.slane %v1134, 4
  %v1136 = vadd.f32 %v1134, %v1135
  %v1137 = vrot.slane %v1136, 2
  %v1138 = vadd.f32 %v1136, %v1137
  %v1139 = vrot.slane %v1138, 1
  %v1140 = vadd.f32 %v1138, %v1139
  %v1141 = vmul.f32 %v1087, %v1087
  %v1142 = vmul.f32 %v1088, %v1088
  %v1143 = vmul.f32 %v1089, %v1089
  %v1144 = vmul.f32 %v1090, %v1090
  %v1145 = vmul.f32 %v1091, %v1091
  %v1146 = vmul.f32 %v1092, %v1092
  %v1147 = vmul.f32 %v1093, %v1093
  %v1148 = vmul.f32 %v1094, %v1094
  %v1149 = vadd.f32 %v1141, %v1143
  %v1150 = vadd.f32 %v1149, %v1145
  %v1151 = vadd.f32 %v1150, %v1147
  %v1152 = vrot.slane %v1151, 4
  %v1153 = vadd.f32 %v1151, %v1152
  %v1154 = vrot.slane %v1153, 2
  %v1155 = vadd.f32 %v1153, %v1154
  %v1156 = vrot.slane %v1155, 1
  %v1157 = vadd.f32 %v1155, %v1156
  %v1158 = vsel %vm90, %v1142, 0.0
  %v1159 = vsel %vm90, %v1144, 0.0
  %v1160 = vadd.f32 %v1158, %v1159
  %v1161 = vsel %vm90, %v1146, 0.0
  %v1162 = vadd.f32 %v1160, %v1161
  %v1163 = vsel %vm90, %v1148, 0.0
  %v1164 = vadd.f32 %v1162, %v1163
  %v1165 = vrot.slane %v1164, 4
  %v1166 = vadd.f32 %v1164, %v1165
  %v1167 = vrot.slane %v1166, 2
  %v1168 = vadd.f32 %v1166, %v1167
  %v1169 = vrot.slane %v1168, 1
  %v1170 = vadd.f32 %v1168, %v1169
  %v1171 = vsel %vm270, %v1127, %v1157
  %v1172 = vsel %vm270, %v1140, %v1170
  %v1174 = vsel %vm90, %v1172, 0
  %1176 = vmatprep.subr.mxu0 0.0
  %1177 = vmatpush1.msra.mxu0 %v1097
  %1178 = vmatprep.subr.mxu0 0.0
  %1179 = vmatpush1.msra.mxu0 %v1098
  %1180 = vmatprep.subr.mxu0 0.0
  %1181 = vmatpush1.msra.mxu0 %v1099
  %1182 = vmatprep.subr.mxu0 0.0
  %1183 = vmatpush1.msra.mxu0 %v1100
  %1184 = vmatprep.subr.mxu0 0.0
  %1185 = vmatpush1.msra.mxu0 %v1101
  %1186 = vmatprep.subr.mxu0 0.0
  %1187 = vmatpush1.msra.mxu0 %v1102
  %1188 = vmatprep.subr.mxu0 0.0
  %1189 = vmatpush1.msra.mxu0 %v1103
  %1190 = vmatprep.subr.mxu0 0.0
  %1191 = vmatpush1.msra.mxu0 %v1104
  %1192 = vmatprep.subr.mxu0 0.0
  %1193 = vmatpush1.msra.mxu0 %v1105
  %1194 = vmatprep.subr.mxu0 0.0
  %1195 = vmatpush1.msra.mxu0 %v1106
  %1196 = vmatprep.subr.mxu0 0.0
  %1197 = vmatpush1.msra.mxu0 %v1107
  %1198 = vmatprep.subr.mxu0 0.0
  %1199 = vmatpush1.msra.mxu0 %v1108
  %1200 = vmatprep.subr.mxu0 0.0
  %1201 = vmatpush1.msra.mxu0 %v1109
  %1202 = vmatprep.subr.mxu0 0.0
  %1203 = vmatpush1.msra.mxu0 %v1110
  %1204 = vmatprep.subr.mxu0 0.0
  %1205 = vmatpush1.msra.mxu0 %v1111
  %1206 = vmatprep.subr.mxu0 0.0
  %1207 = vmatpush1.msra.mxu0 %v1112
  %1208 = vmatprep.subr.mxu0 0.0
  %1209 = vmatpush1.msra.mxu0 %v1113
  %1210 = vmatprep.subr.mxu0 0.0
  %1211 = vmatpush1.msra.mxu0 %v1114
  %1212 = vmatprep.subr.mxu0 0.0
  %1213 = vmatpush1.msra.mxu0 %v1115
  %1214 = vmatprep.subr.mxu0 0.0
  %1215 = vmatpush1.msra.mxu0 %v1116
  %1216 = vmatprep.subr.mxu0 0.0
  %1217 = vmatpush1.msra.mxu0 0.0
  %1218 = vmatprep.subr.mxu0 0.0
  %1219 = vmatpush1.msra.mxu0 0.0
  %1220 = vmatprep.subr.mxu0 0.0
  %1221 = vmatpush1.msra.mxu0 0.0
  %1222 = vmatprep.subr.mxu0 0.0
  %1223 = vmatpush1.msra.mxu0 0.0
  %1224 = vmatprep.subr.mxu0 0.0
  %1225 = vmatpush1.msra.mxu0 0.0
  %1226 = vmatprep.subr.mxu0 0.0
  %1227 = vmatpush1.msra.mxu0 0.0
  %1228 = vmatprep.subr.mxu0 0.0
  %1229 = vmatpush1.msra.mxu0 0.0
  %1230 = vmatprep.subr.mxu0 0.0
  %1231 = vmatpush1.msra.mxu0 0.0
  %1232 = vmatprep.subr.mxu0 0.0
  %1233 = vmatpush1.msra.mxu0 0.0
  %1234 = vmatprep.subr.mxu0 0.0
  %1235 = vmatpush1.msra.mxu0 0.0
  %1236 = vmatprep.subr.mxu0 0.0
  %1237 = vmatpush1.msra.mxu0 0.0
  %1238 = vmatprep.subr.mxu0 0.0
  %1239 = vmatpush1.msra.mxu0 0.0
  %1240 = vmatprep.mubr.f32.mxu0 %v1174
  %1241 = vmatmul.mubr.f32.gmra.mrb[0].mxu0 %v1171
  %v1242 = vpop.f32.mrb[0].mxu0
  %v1243 = vadd.f32 0.0, %v1242
  %v1244 = vpop.f32.mrb[0].mxu0
  %1245 = vdwg.mxu0
  %v1246 = vmul.f32 %v1243, 0.0078125
  %v1247 = vmul.f32 %v1246, %v1246
  %v1249 = vrot.slane %v1247, 7
  %v1251 = vsub.f32 %v1246, %v1249
  %v1252 = vadd.f32 %v1251, 1e-05
  %v1253 = vrsqrt.pop %v1252
  %v1256 = vunpack.c.l.s4 1966171168
  %v1257 = vunpack.c.0.s8 %v1256
  %v1258 = vlaneseq
  %v1259 = vshrl.u32 %v1258, 7
  %v1260 = vsub.s32 %v1257, %v1259
  %v1261 = vrot.slane %v1253, %v1260
  %v1262 = vcombine.high %v1261, %v1261
  %v1264 = vunpack.c.l.s4 1966171168
  %v1265 = vunpack.c.0.s8 %v1264
  %v1266 = vlaneseq
  %v1267 = vshrl.u32 %v1266, 7
  %v1268 = vsub.s32 %v1265, %v1267
  %v1269 = vrot.slane %v1262, %v1268
  %v1271 = vmul.f32 %v1095, %v1269
  %v1272 = vmul.f32 %v1246, %v1271
  %v1273 = vsub.f32 %v1096, %v1272
  %v1275 = vlaneseq
  %v1276 = vshrl.u32 %v1275, 7
  %v1277 = vsub.s32 0, %v1276
  %v1278 = vrot.slane %v1273, %v1277
  %v1280 = vsel %vm270, %v1271, %v1278
  %vm1281 = vcmask 64512
  %v1283 = vsel %vm1281, %v1280, 0
  %1285 = vmatprep.subr.mxu0 %v1118
  %1286 = vmatpush1.msra.mxu0 %v1117
  %1287 = vmatprep.subr.mxu0 0.0
  %1288 = vmatpush1.msra.mxu0 0.0
  %1289 = vmatprep.subr.mxu0 0.0
  %1290 = vmatpush1.msra.mxu0 0.0
  %1291 = vmatprep.subr.mxu0 0.0
  %1292 = vmatpush1.msra.mxu0 0.0
  %1293 = vmatprep.subr.mxu0 0.0
  %1294 = vmatpush1.msra.mxu0 0.0
  %1295 = vmatprep.subr.mxu0 0.0
  %1296 = vmatpush1.msra.mxu0 0.0
  %1297 = vmatprep.subr.mxu0 0.0
  %1298 = vmatpush1.msra.mxu0 0.0
  %1299 = vmatprep.subr.mxu0 0.0
  %1300 = vmatpush1.msra.mxu0 0.0
  %1301 = vmatprep.subr.mxu0 0.0
  %1302 = vmatpush1.msra.mxu0 0.0
  %1303 = vmatprep.subr.mxu0 0.0
  %1304 = vmatpush1.msra.mxu0 0.0
  %1305 = vmatprep.subr.mxu0 0.0
  %1306 = vmatpush1.msra.mxu0 0.0
  %1307 = vmatprep.subr.mxu0 0.0
  %1308 = vmatpush1.msra.mxu0 0.0
  %1309 = vmatprep.subr.mxu0 0.0
  %1310 = vmatpush1.msra.mxu0 0.0
  %1311 = vmatprep.subr.mxu0 0.0
  %1312 = vmatpush1.msra.mxu0 0.0
  %1313 = vmatprep.subr.mxu0 0.0
  %1314 = vmatpush1.msra.mxu0 0.0
  %1315 = vmatprep.subr.mxu0 0.0
  %1316 = vmatpush1.msra.mxu0 0.0
  %1317 = vmatprep.subr.mxu0 0.0
  %1318 = vmatpush1.msra.mxu0 0.0
  %1319 = vmatprep.subr.mxu0 0.0
  %1320 = vmatpush1.msra.mxu0 0.0
  %1321 = vmatprep.subr.mxu0 0.0
  %1322 = vmatpush1.msra.mxu0 0.0
  %1323 = vmatprep.subr.mxu0 0.0
  %1324 = vmatpush1.msra.mxu0 0.0
  %1325 = vmatprep.subr.mxu0 0.0
  %1326 = vmatpush1.msra.mxu0 0.0
  %1327 = vmatprep.subr.mxu0 0.0
  %1328 = vmatpush1.msra.mxu0 0.0
  %1329 = vmatprep.subr.mxu0 0.0
  %1330 = vmatpush1.msra.mxu0 0.0
  %1331 = vmatprep.subr.mxu0 0.0
  %1332 = vmatpush1.msra.mxu0 0.0
  %1333 = vmatprep.subr.mxu0 0.0
  %1334 = vmatpush1.msra.mxu0 0.0
  %1335 = vmatprep.subr.mxu0 0.0
  %1336 = vmatpush1.msra.mxu0 0.0
  %1337 = vmatprep.subr.mxu0 0.0
  %1338 = vmatpush1.msra.mxu0 0.0
  %1339 = vmatprep.subr.mxu0 0.0
  %1340 = vmatpush1.msra.mxu0 0.0
  %1341 = vmatprep.subr.mxu0 0.0
  %1342 = vmatpush1.msra.mxu0 0.0
  %1343 = vmatprep.subr.mxu0 0.0
  %1344 = vmatpush1.msra.mxu0 0.0
  %1345 = vmatprep.subr.mxu0 0.0
  %1346 = vmatpush1.msra.mxu0 0.0
  %1347 = vmatprep.subr.mxu0 0.0
  %1348 = vmatpush1.msra.mxu0 0.0
  %1349 = vmatprep.mubr.f32.mxu0 0.0
  %1350 = vmatmul.mubr.f32.gmra.mrb[0].mxu0 %v1283
  %v1351 = vpop.f32.mrb[0].mxu0
  %v1352 = vadd.f32 0.0, %v1351
  %v1353 = vpop.f32.mrb[0].mxu0
  %v1354 = vadd.f32 0.0, %v1353
  %1355 = vdwg.mxu0
  %v1356 = vlaneseq
  %v1357 = vshrl.u32 %v1356, 7
  %v1358 = vsub.s32 0, %v1357
  %v1359 = vrot.slane %v1352, %v1358
  %v1360 = vlaneseq
  %v1361 = vshrl.u32 %v1360, 7
  %v1362 = vsub.s32 0, %v1361
  %v1363 = vrot.slane %v1354, %v1362
  %v1364 = vmul.f32 %v1087, %v1359
  %v1365 = vmul.f32 %v1088, %v1363
  %v1366 = vmul.f32 %v1089, %v1359
  %v1367 = vmul.f32 %v1090, %v1363
  %v1368 = vmul.f32 %v1091, %v1359
  %v1369 = vmul.f32 %v1092, %v1363
  %v1370 = vmul.f32 %v1093, %v1359
  %v1371 = vmul.f32 %v1094, %v1363
  %v1372 = vlaneseq
  %v1373 = vshrl.u32 %v1372, 7
  %v1374 = vsub.s32 1, %v1373
  %v1375 = vrot.slane %v1352, %v1374
  %v1376 = vlaneseq
  %v1377 = vshrl.u32 %v1376, 7
  %v1378 = vsub.s32 1, %v1377
  %v1379 = vrot.slane %v1354, %v1378
  %v1380 = vadd.f32 %v1364, %v1375
  %v1381 = vadd.f32 %v1365, %v1379
  %v1382 = vadd.f32 %v1366, %v1375
  %v1383 = vadd.f32 %v1367, %v1379
  %v1384 = vadd.f32 %v1368, %v1375
  %v1385 = vadd.f32 %v1369, %v1379
  %v1386 = vadd.f32 %v1370, %v1375
  %v1387 = vadd.f32 %v1371, %v1379
  %vm1388 = vcmp.gt.f32.partialorder %v1380, 0.0
  %vm1389 = vcmp.gt.f32.partialorder %v1381, 0.0
  %vm1390 = vcmp.gt.f32.partialorder %v1382, 0.0
  %vm1391 = vcmp.gt.f32.partialorder %v1383, 0.0
  %vm1392 = vcmp.gt.f32.partialorder %v1384, 0.0
  %vm1393 = vcmp.gt.f32.partialorder %v1385, 0.0
  %vm1394 = vcmp.gt.f32.partialorder %v1386, 0.0
  %vm1395 = vcmp.gt.f32.partialorder %v1387, 0.0
  %v1396 = vmul.f32 %v1380, 1.442695
  %v1397 = vpow.pop %v1396
  %v1398 = vmul.f32 %v1381, 1.442695
  %v1399 = vpow.pop %v1398
  %v1400 = vmul.f32 %v1382, 1.442695
  %v1401 = vpow.pop %v1400
  %v1402 = vmul.f32 %v1383, 1.442695
  %v1403 = vpow.pop %v1402
  %v1404 = vmul.f32 %v1384, 1.442695
  %v1405 = vpow.pop %v1404
  %v1406 = vmul.f32 %v1385, 1.442695
  %v1407 = vpow.pop %v1406
  %v1408 = vmul.f32 %v1386, 1.442695
  %v1409 = vpow.pop %v1408
  %v1410 = vmul.f32 %v1387, 1.442695
  %v1411 = vpow.pop %v1410
  %v1412 = vsub.f32 %v1397, 1.0
  %v1413 = vsub.f32 %v1399, 1.0
  %v1414 = vsub.f32 %v1401, 1.0
  %v1415 = vsub.f32 %v1403, 1.0
  %v1416 = vsub.f32 %v1405, 1.0
  %v1417 = vsub.f32 %v1407, 1.0
  %v1418 = vsub.f32 %v1409, 1.0
  %v1419 = vsub.f32 %v1411, 1.0
  %v1420 = vmul.f32 %v1412, 1.6732632
  %v1421 = vmul.f32 %v1413, 1.6732632
  %v1422 = vmul.f32 %v1414, 1.6732632
  %v1423 = vmul.f32 %v1415, 1.6732632
  %v1424 = vmul.f32 %v1416, 1.6732632
  %v1425 = vmul.f32 %v1417, 1.6732632
  %v1426 = vmul.f32 %v1418, 1.6732632
  %v1427 = vmul.f32 %v1419, 1.6732632
  %v1428 = vsel %vm1388, %v1380, %v1420
  %v1429 = vsel %vm1389, %v1381, %v1421
  %v1430 = vsel %vm1390, %v1382, %v1422
  %v1431 = vsel %vm1391, %v1383, %v1423
  %v1432 = vsel %vm1392, %v1384, %v1424
  %v1433 = vsel %vm1393, %v1385, %v1425
  %v1434 = vsel %vm1394, %v1386, %v1426
  %v1435 = vsel %vm1395, %v1387, %v1427
  %v1436 = vmul.f32 %v1428, 1.050701
  %v1437 = vmul.f32 %v1429, 1.050701
  %v1438 = vmul.f32 %v1430, 1.050701
  %v1439 = vmul.f32 %v1431, 1.050701
  %v1440 = vmul.f32 %v1432, 1.050701
  %v1441 = vmul.f32 %v1433, 1.050701
  %v1442 = vmul.f32 %v1434, 1.050701
  %v1443 = vmul.f32 %v1435, 1.050701
  %v1444 = vld [vmem:[%s12] sm:$0xff]
  %v1445 = vld [vmem:[%s12 + $0x8] sm:$0xff]
  %v1446 = vld [vmem:[%s12 + $0x10] sm:$0xff]
  %v1447 = vld [vmem:[%s12 + $0x18] sm:$0xff]
  %v1448 = vld [vmem:[%s12 + $0x20] sm:$0xff]
  %v1449 = vld [vmem:[%s12 + $0x28] sm:$0xff]
  %v1450 = vld [vmem:[%s12 + $0x30] sm:$0xff]
  %v1451 = vld [vmem:[%s12 + $0x38] sm:$0xff]
  %v1452 = vmul.f32 %v1436, %v1444
  %v1453 = vmul.f32 %v1437, %v1445
  %v1454 = vmul.f32 %v1438, %v1446
  %v1455 = vmul.f32 %v1439, %v1447
  %v1456 = vmul.f32 %v1440, %v1448
  %v1457 = vmul.f32 %v1441, %v1449
  %v1458 = vmul.f32 %v1442, %v1450
  %v1459 = vmul.f32 %v1443, %v1451
  %vm1460 = vcmask 654336
  %1461 = vst.msk [vmem:[#allocation3] sm:$0xff] %vm1460, 0.0
  %1462 = vst.msk [vmem:[#allocation3 + $0x48] sm:$0xff] %vm1460, 0.0
  %1463 = vst.msk [vmem:[#allocation3 + $0x8] sm:$0xff] %vm1460, %v1452
  %1466 = vrot.lane.b32.xlu0 %v1452, 48
  %v1467 = vpop.permute.xlu0 %1466
  %1468 = vrot.lane.b32.xlu0 %v1453, 48
  %v1469 = vpop.permute.xlu0 %1468
  %vm1470 = vcmask 392192
  %v1471 = vsel %vm1470, %v1467, %v1469
  %1473 = vst.msk [vmem:[#allocation3 + $0x10] sm:$0xff] %vm1460, %v1471
  %1474 = vst.msk [vmem:[#allocation3 + $0x18] sm:$0xff] %vm1460, %v1454
  %1477 = vrot.lane.b32.xlu0 %v1454, 48
  %v1478 = vpop.permute.xlu0 %1477
  %1479 = vrot.lane.b32.xlu0 %v1455, 48
  %v1480 = vpop.permute.xlu0 %1479
  %v1481 = vsel %vm1470, %v1478, %v1480
  %1483 = vst.msk [vmem:[#allocation3 + $0x20] sm:$0xff] %vm1460, %v1481
  %1484 = vst.msk [vmem:[#allocation3 + $0x28] sm:$0xff] %vm1460, %v1456
  %1487 = vrot.lane.b32.xlu0 %v1456, 48
  %v1488 = vpop.permute.xlu0 %1487
  %1489 = vrot.lane.b32.xlu0 %v1457, 48
  %v1490 = vpop.permute.xlu0 %1489
  %v1491 = vsel %vm1470, %v1488, %v1490
  %1493 = vst.msk [vmem:[#allocation3 + $0x30] sm:$0xff] %vm1460, %v1491
  %1494 = vst.msk [vmem:[#allocation3 + $0x38] sm:$0xff] %vm1460, %v1458
  %1497 = vrot.lane.b32.xlu0 %v1458, 48
  %v1498 = vpop.permute.xlu0 %1497
  %1499 = vrot.lane.b32.xlu0 %v1459, 48
  %v1500 = vpop.permute.xlu0 %1499
  %v1501 = vsel %vm1470, %v1498, %v1500
  %1503 = vst.msk [vmem:[#allocation3 + $0x40] sm:$0xff] %vm1460, %v1501
  %v1504 = vld [vmem:[#allocation3] sm:$0xff]
  %v1505 = vld [vmem:[#allocation3 + $0x8] sm:$0xff]
  %v1506 = vld [vmem:[#allocation3 + $0x10] sm:$0xff]
  %v1507 = vld [vmem:[#allocation3 + $0x18] sm:$0xff]
  %v1508 = vld [vmem:[#allocation3 + $0x20] sm:$0xff]
  %v1509 = vld [vmem:[#allocation3 + $0x28] sm:$0xff]
  %v1510 = vld [vmem:[#allocation3 + $0x30] sm:$0xff]
  %v1511 = vld [vmem:[#allocation3 + $0x38] sm:$0xff]
  %v1512 = vld [vmem:[#allocation3 + $0x40] sm:$0xff]
  %v1513 = vld [vmem:[#allocation3 + $0x48] sm:$0xff]
  %v1514 = vpack.c.bf16 %v1505, %v1504
  %v1515 = vpack.c.bf16 %v1507, %v1506
  %v1516 = vpack.c.bf16 %v1509, %v1508
  %v1517 = vpack.c.bf16 %v1511, %v1510
  %v1518 = vpack.c.bf16 %v1513, %v1512
  %v1519 = vld [vmem:[%s13] sm:$0xf]
  %v1520 = vld [vmem:[%s13 + $0x4] sm:$0xf]
  %v1521 = vld [vmem:[%s13 + $0x8] sm:$0xf]
  %v1522 = vld [vmem:[%s13 + $0xc] sm:$0xf]
  %v1523 = vld [vmem:[%s13 + $0x10] sm:$0xf]
  %v1524 = vld [vmem:[%s13 + $0x14] sm:$0xf]
  %v1525 = vld [vmem:[%s13 + $0x18] sm:$0xf]
  %v1526 = vld [vmem:[%s13 + $0x1c] sm:$0xf]
  %v1527 = vld [vmem:[%s13 + $0x20] sm:$0xf]
  %v1528 = vld [vmem:[%s13 + $0x24] sm:$0xf]
  %s1529 = scalar_lea.vmem %s13, 40
  %v1530 = vld [vmem:[%s1529] sm:$0xf]
  %v1531 = vld [vmem:[%s1529 + $0x4] sm:$0xf]
  %v1532 = vld [vmem:[%s1529 + $0x8] sm:$0xf]
  %v1533 = vld [vmem:[%s1529 + $0xc] sm:$0xf]
  %v1534 = vld [vmem:[%s1529 + $0x10] sm:$0xf]
  %v1535 = vld [vmem:[%s1529 + $0x14] sm:$0xf]
  %v1536 = vld [vmem:[%s1529 + $0x18] sm:$0xf]
  %v1537 = vld [vmem:[%s1529 + $0x1c] sm:$0xf]
  %v1538 = vld [vmem:[%s1529 + $0x20] sm:$0xf]
  %v1539 = vld [vmem:[%s1529 + $0x24] sm:$0xf]
  %v1545 = vrot.slane %v1514, 4
  %v1546 = vrot.slane %v1515, 4
  %v1547 = vsel %vm714, %v1545, %v1546
  %v1548 = vrot.slane %v1516, 4
  %v1549 = vsel %vm714, %v1546, %v1548
  %v1550 = vrot.slane %v1517, 4
  %v1551 = vsel %vm714, %v1548, %v1550
  %v1552 = vrot.slane %v1518, 4
  %v1553 = vsel %vm714, %v1550, %v1552
  %v1564 = vunpack.c.l.b16 %v1530
  %v1565 = vunpack.c.l.b16 %v1531
  %v1566 = vunpack.c.l.b16 %v1532
  %v1567 = vunpack.c.l.b16 %v1533
  %v1568 = vunpack.c.l.b16 %v1534
  %v1569 = vunpack.c.l.b16 %v1535
  %v1570 = vunpack.c.l.b16 %v1536
  %v1571 = vunpack.c.l.b16 %v1537
  %v1572 = vunpack.c.l.b16 %v1538
  %v1573 = vunpack.c.l.b16 %v1539
  %v1574 = vpack.c.b16 %v1565, %v1564
  %v1575 = vpack.c.b16 %v1567, %v1566
  %v1576 = vpack.c.b16 %v1569, %v1568
  %v1577 = vpack.c.b16 %v1571, %v1570
  %v1578 = vpack.c.b16 %v1573, %v1572
  %v1585 = vsel %vm1460, %v1547, 0
  %v1588 = vsel %vm1460, %v1549, 0
  %v1591 = vsel %vm1460, %v1551, 0
  %v1594 = vsel %vm1460, %v1553, 0
  %1596 = vmatprep.subr.bf16.mxu0 0
  %1597 = vmatpush1.bf16.msra.mxu0 %v1574
  %1598 = vmatprep.subr.bf16.mxu0 0
  %1599 = vmatpush1.bf16.msra.mxu0 %v1575
  %1600 = vmatprep.subr.bf16.mxu0 0
  %1601 = vmatpush1.bf16.msra.mxu0 %v1576
  %1602 = vmatprep.subr.bf16.mxu0 0
  %1603 = vmatpush1.bf16.msra.mxu0 %v1577
  %1604 = vmatprep.subr.bf16.mxu0 0
  %1605 = vmatpush1.bf16.msra.mxu0 %v1578
  %1606 = vmatprep.subr.bf16.mxu0 0
  %1607 = vmatpush1.bf16.msra.mxu0 0
  %1608 = vmatprep.subr.bf16.mxu0 0
  %1609 = vmatpush1.bf16.msra.mxu0 0
  %1610 = vmatprep.subr.bf16.mxu0 0
  %1611 = vmatpush1.bf16.msra.mxu0 0
  %1612 = vmatprep.subr.bf16.mxu0 0
  %1613 = vmatpush1.bf16.msra.mxu0 0
  %1614 = vmatprep.subr.bf16.mxu0 0
  %1615 = vmatpush1.bf16.msra.mxu0 0
  %1616 = vmatprep.subr.bf16.mxu0 0
  %1617 = vmatpush1.bf16.msra.mxu0 0
  %1618 = vmatprep.subr.bf16.mxu0 0
  %1619 = vmatpush1.bf16.msra.mxu0 0
  %1620 = vmatprep.subr.bf16.mxu0 0
  %1621 = vmatpush1.bf16.msra.mxu0 0
  %1622 = vmatprep.subr.bf16.mxu0 0
  %1623 = vmatpush1.bf16.msra.mxu0 0
  %1624 = vmatprep.subr.bf16.mxu0 0
  %1625 = vmatpush1.bf16.msra.mxu0 0
  %1626 = vmatprep.subr.bf16.mxu0 0
  %1627 = vmatpush1.bf16.msra.mxu0 0
  %1628 = vmatprep.mubr.bf16.mxu0 0
  %1629 = vmatmul.mubr.bf16.gmra.mrb[0].mxu0 %v1585
  %v1630 = vpop.f32.mrb[0].mxu0
  %v1631 = vadd.f32 0.0, %v1630
  %v1632 = vpop.f32.mrb[0].mxu0
  %v1633 = vpop.f32.mrb[0].mxu0
  %v1634 = vadd.f32 0.0, %v1633
  %v1635 = vpop.f32.mrb[0].mxu0
  %1636 = vmatprep.mubr.bf16.mxu0 0
  %1637 = vmatmul.mubr.bf16.gmra.mrb[0].mxu0 %v1588
  %v1638 = vpop.f32.mrb[0].mxu0
  %v1639 = vadd.f32 0.0, %v1638
  %v1640 = vpop.f32.mrb[0].mxu0
  %v1641 = vpop.f32.mrb[0].mxu0
  %v1642 = vadd.f32 0.0, %v1641
  %v1643 = vpop.f32.mrb[0].mxu0
  %1644 = vmatprep.mubr.bf16.mxu0 0
  %1645 = vmatmul.mubr.bf16.gmra.mrb[0].mxu0 %v1591
  %v1646 = vpop.f32.mrb[0].mxu0
  %v1647 = vadd.f32 0.0, %v1646
  %v1648 = vpop.f32.mrb[0].mxu0
  %v1649 = vpop.f32.mrb[0].mxu0
  %v1650 = vadd.f32 0.0, %v1649
  %v1651 = vpop.f32.mrb[0].mxu0
  %1652 = vmatprep.mubr.bf16.mxu0 0
  %1653 = vmatmul.mubr.bf16.gmra.mrb[0].mxu0 %v1594
  %v1654 = vpop.f32.mrb[0].mxu0
  %v1655 = vadd.f32 0.0, %v1654
  %v1656 = vpop.f32.mrb[0].mxu0
  %v1657 = vpop.f32.mrb[0].mxu0
  %v1658 = vadd.f32 0.0, %v1657
  %v1659 = vpop.f32.mrb[0].mxu0
  %1660 = vdwg.mxu0
  %v1671 = vunpack.c.l.b16 %v1519
  %v1672 = vunpack.c.l.b16 %v1520
  %v1673 = vunpack.c.l.b16 %v1521
  %v1674 = vunpack.c.l.b16 %v1522
  %v1675 = vunpack.c.l.b16 %v1523
  %v1676 = vunpack.c.l.b16 %v1524
  %v1677 = vunpack.c.l.b16 %v1525
  %v1678 = vunpack.c.l.b16 %v1526
  %v1679 = vunpack.c.l.b16 %v1527
  %v1680 = vunpack.c.l.b16 %v1528
  %v1681 = vpack.c.b16 %v1672, %v1671
  %v1682 = vpack.c.b16 %v1674, %v1673
  %v1683 = vpack.c.b16 %v1676, %v1675
  %v1684 = vpack.c.b16 %v1678, %v1677
  %v1685 = vpack.c.b16 %v1680, %v1679
  %v1692 = vsel %vm1460, %v1514, 0
  %v1695 = vsel %vm1460, %v1515, 0
  %v1698 = vsel %vm1460, %v1516, 0
  %v1701 = vsel %vm1460, %v1517, 0
  %1703 = vmatprep.subr.bf16.mxu0 0
  %1704 = vmatpush1.bf16.msra.mxu0 %v1681
  %1705 = vmatprep.subr.bf16.mxu0 0
  %1706 = vmatpush1.bf16.msra.mxu0 %v1682
  %1707 = vmatprep.subr.bf16.mxu0 0
  %1708 = vmatpush1.bf16.msra.mxu0 %v1683
  %1709 = vmatprep.subr.bf16.mxu0 0
  %1710 = vmatpush1.bf16.msra.mxu0 %v1684
  %1711 = vmatprep.subr.bf16.mxu0 0
  %1712 = vmatpush1.bf16.msra.mxu0 %v1685
  %1713 = vmatprep.subr.bf16.mxu0 0
  %1714 = vmatpush1.bf16.msra.mxu0 0
  %1715 = vmatprep.subr.bf16.mxu0 0
  %1716 = vmatpush1.bf16.msra.mxu0 0
  %1717 = vmatprep.subr.bf16.mxu0 0
  %1718 = vmatpush1.bf16.msra.mxu0 0
  %1719 = vmatprep.subr.bf16.mxu0 0
  %1720 = vmatpush1.bf16.msra.mxu0 0
  %1721 = vmatprep.subr.bf16.mxu0 0
  %1722 = vmatpush1.bf16.msra.mxu0 0
  %1723 = vmatprep.subr.bf16.mxu0 0
  %1724 = vmatpush1.bf16.msra.mxu0 0
  %1725 = vmatprep.subr.bf16.mxu0 0
  %1726 = vmatpush1.bf16.msra.mxu0 0
  %1727 = vmatprep.subr.bf16.mxu0 0
  %1728 = vmatpush1.bf16.msra.mxu0 0
  %1729 = vmatprep.subr.bf16.mxu0 0
  %1730 = vmatpush1.bf16.msra.mxu0 0
  %1731 = vmatprep.subr.bf16.mxu0 0
  %1732 = vmatpush1.bf16.msra.mxu0 0
  %1733 = vmatprep.subr.bf16.mxu0 0
  %1734 = vmatpush1.bf16.msra.mxu0 0
  %1735 = vmatprep.mubr.bf16.mxu0 0
  %1736 = vmatmul.mubr.bf16.gmra.mrb[0].mxu0 %v1692
  %v1737 = vpop.f32.mrb[0].mxu0
  %v1738 = vadd.f32 %v1631, %v1737
  %v1739 = vpop.f32.mrb[0].mxu0
  %v1740 = vpop.f32.mrb[0].mxu0
  %v1741 = vadd.f32 %v1634, %v1740
  %v1742 = vpop.f32.mrb[0].mxu0
  %1743 = vmatprep.mubr.bf16.mxu0 0
  %1744 = vmatmul.mubr.bf16.gmra.mrb[0].mxu0 %v1695
  %v1745 = vpop.f32.mrb[0].mxu0
  %v1746 = vadd.f32 %v1639, %v1745
  %v1747 = vpop.f32.mrb[0].mxu0
  %v1748 = vpop.f32.mrb[0].mxu0
  %v1749 = vadd.f32 %v1642, %v1748
  %v1750 = vpop.f32.mrb[0].mxu0
  %1751 = vmatprep.mubr.bf16.mxu0 0
  %1752 = vmatmul.mubr.bf16.gmra.mrb[0].mxu0 %v1698
  %v1753 = vpop.f32.mrb[0].mxu0
  %v1754 = vadd.f32 %v1647, %v1753
  %v1755 = vpop.f32.mrb[0].mxu0
  %v1756 = vpop.f32.mrb[0].mxu0
  %v1757 = vadd.f32 %v1650, %v1756
  %v1758 = vpop.f32.mrb[0].mxu0
  %1759 = vmatprep.mubr.bf16.mxu0 0
  %1760 = vmatmul.mubr.bf16.gmra.mrb[0].mxu0 %v1701
  %v1761 = vpop.f32.mrb[0].mxu0
  %v1762 = vadd.f32 %v1655, %v1761
  %v1763 = vpop.f32.mrb[0].mxu0
  %v1764 = vpop.f32.mrb[0].mxu0
  %v1765 = vadd.f32 %v1658, %v1764
  %v1766 = vpop.f32.mrb[0].mxu0
  %1767 = vdwg.mxu0
  %s1768 = scalar_lea.vmem %s13, 80
  %v1769 = vld [vmem:[%s1768] sm:$0xf]
  %v1770 = vld [vmem:[%s1768 + $0x4] sm:$0xf]
  %v1771 = vld [vmem:[%s1768 + $0x8] sm:$0xf]
  %v1772 = vld [vmem:[%s1768 + $0xc] sm:$0xf]
  %v1773 = vld [vmem:[%s1768 + $0x10] sm:$0xf]
  %v1774 = vld [vmem:[%s1768 + $0x14] sm:$0xf]
  %v1775 = vld [vmem:[%s1768 + $0x18] sm:$0xf]
  %v1776 = vld [vmem:[%s1768 + $0x1c] sm:$0xf]
  %v1777 = vld [vmem:[%s1768 + $0x20] sm:$0xf]
  %v1778 = vld [vmem:[%s1768 + $0x24] sm:$0xf]
  %v1789 = vunpack.c.l.b16 %v1769
  %v1790 = vunpack.c.l.b16 %v1770
  %v1791 = vunpack.c.l.b16 %v1771
  %v1792 = vunpack.c.l.b16 %v1772
  %v1793 = vunpack.c.l.b16 %v1773
  %v1794 = vunpack.c.l.b16 %v1774
  %v1795 = vunpack.c.l.b16 %v1775
  %v1796 = vunpack.c.l.b16 %v1776
  %v1797 = vunpack.c.l.b16 %v1777
  %v1798 = vunpack.c.l.b16 %v1778
  %v1799 = vpack.c.b16 %v1790, %v1789
  %v1800 = vpack.c.b16 %v1792, %v1791
  %v1801 = vpack.c.b16 %v1794, %v1793
  %v1802 = vpack.c.b16 %v1796, %v1795
  %v1803 = vpack.c.b16 %v1798, %v1797
  %v1810 = vsel %vm1460, %v1518, 0
  %1812 = vmatprep.subr.bf16.mxu0 0
  %1813 = vmatpush1.bf16.msra.mxu0 %v1799
  %1814 = vmatprep.subr.bf16.mxu0 0
  %1815 = vmatpush1.bf16.msra.mxu0 %v1800
  %1816 = vmatprep.subr.bf16.mxu0 0
  %1817 = vmatpush1.bf16.msra.mxu0 %v1801
  %1818 = vmatprep.subr.bf16.mxu0 0
  %1819 = vmatpush1.bf16.msra.mxu0 %v1802
  %1820 = vmatprep.subr.bf16.mxu0 0
  %1821 = vmatpush1.bf16.msra.mxu0 %v1803
  %1822 = vmatprep.subr.bf16.mxu0 0
  %1823 = vmatpush1.bf16.msra.mxu0 0
  %1824 = vmatprep.subr.bf16.mxu0 0
  %1825 = vmatpush1.bf16.msra.mxu0 0
  %1826 = vmatprep.subr.bf16.mxu0 0
  %1827 = vmatpush1.bf16.msra.mxu0 0
  %1828 = vmatprep.subr.bf16.mxu0 0
  %1829 = vmatpush1.bf16.msra.mxu0 0
  %1830 = vmatprep.subr.bf16.mxu0 0
  %1831 = vmatpush1.bf16.msra.mxu0 0
  %1832 = vmatprep.subr.bf16.mxu0 0
  %1833 = vmatpush1.bf16.msra.mxu0 0
  %1834 = vmatprep.subr.bf16.mxu0 0
  %1835 = vmatpush1.bf16.msra.mxu0 0
  %1836 = vmatprep.subr.bf16.mxu0 0
  %1837 = vmatpush1.bf16.msra.mxu0 0
  %1838 = vmatprep.subr.bf16.mxu0 0
  %1839 = vmatpush1.bf16.msra.mxu0 0
  %1840 = vmatprep.subr.bf16.mxu0 0
  %1841 = vmatpush1.bf16.msra.mxu0 0
  %1842 = vmatprep.subr.bf16.mxu0 0
  %1843 = vmatpush1.bf16.msra.mxu0 0
  %1844 = vmatprep.mubr.bf16.mxu0 0
  %1845 = vmatmul.mubr.bf16.gmra.mrb[0].mxu0 %v1695
  %v1846 = vpop.f32.mrb[0].mxu0
  %v1847 = vadd.f32 0.0, %v1846
  %v1848 = vpop.f32.mrb[0].mxu0
  %v1849 = vpop.f32.mrb[0].mxu0
  %v1850 = vadd.f32 0.0, %v1849
  %v1851 = vpop.f32.mrb[0].mxu0
  %1852 = vmatprep.mubr.bf16.mxu0 0
  %1853 = vmatmul.mubr.bf16.gmra.mrb[0].mxu0 %v1698
  %v1854 = vpop.f32.mrb[0].mxu0
  %v1855 = vadd.f32 0.0, %v1854
  %v1856 = vpop.f32.mrb[0].mxu0
  %v1857 = vpop.f32.mrb[0].mxu0
  %v1858 = vadd.f32 0.0, %v1857
  %v1859 = vpop.f32.mrb[0].mxu0
  %1860 = vmatprep.mubr.bf16.mxu0 0
  %1861 = vmatmul.mubr.bf16.gmra.mrb[0].mxu0 %v1701
  %v1862 = vpop.f32.mrb[0].mxu0
  %v1863 = vadd.f32 0.0, %v1862
  %v1864 = vpop.f32.mrb[0].mxu0
  %v1865 = vpop.f32.mrb[0].mxu0
  %v1866 = vadd.f32 0.0, %v1865
  %v1867 = vpop.f32.mrb[0].mxu0
  %1868 = vmatprep.mubr.bf16.mxu0 0
  %1869 = vmatmul.mubr.bf16.gmra.mrb[0].mxu0 %v1810
  %v1870 = vpop.f32.mrb[0].mxu0
  %v1871 = vadd.f32 0.0, %v1870
  %v1872 = vpop.f32.mrb[0].mxu0
  %v1873 = vpop.f32.mrb[0].mxu0
  %v1874 = vadd.f32 0.0, %v1873
  %v1875 = vpop.f32.mrb[0].mxu0
  %1876 = vdwg.mxu0
  %v1877 = vadd.f32 %v1738, %v1847
  %v1878 = vadd.f32 %v1741, %v1850
  %v1879 = vadd.f32 %v1746, %v1855
  %v1880 = vadd.f32 %v1749, %v1858
  %v1881 = vadd.f32 %v1754, %v1863
  %v1882 = vadd.f32 %v1757, %v1866
  %v1883 = vadd.f32 %v1762, %v1871
  %v1884 = vadd.f32 %v1765, %v1874
  %v1885 = vtanh.pop %v1877
  %v1886 = vtanh.pop %v1878
  %v1887 = vtanh.pop %v1879
  %v1888 = vtanh.pop %v1880
  %v1889 = vtanh.pop %v1881
  %v1890 = vtanh.pop %v1882
  %v1891 = vtanh.pop %v1883
  %v1892 = vtanh.pop %v1884
  %1893 = vst [vmem:[%s14] sm:$0xff] %v1885
  %1894 = vst [vmem:[%s14 + $0x8] sm:$0xff] %v1886
  %1895 = vst [vmem:[%s14 + $0x10] sm:$0xff] %v1887
  %1896 = vst [vmem:[%s14 + $0x18] sm:$0xff] %v1888
  %1897 = vst [vmem:[%s14 + $0x20] sm:$0xff] %v1889
  %1898 = vst [vmem:[%s14 + $0x28] sm:$0xff] %v1890
  %1899 = vst [vmem:[%s14 + $0x30] sm:$0xff] %v1891
  %1900 = vst [vmem:[%s14 + $0x38] sm:$0xff] %v1892
  // Predicated region
  $region58: #{cnn_neural_rasterizer_forward.1} parent=0 // pred_check
    _
  $region59: #{cnn_neural_rasterizer_forward.1} parent=0 // pred_check_branch
    %1902 = sbr.rel (0) target = $region61
  $region60: #{cnn_neural_rasterizer_forward.1} parent=0 // pred_region
    _
  $region61: #{cnn_neural_rasterizer_forward.1} parent=0 // pred_fallthru
    _
  // Predicated region
  $region62: #{cnn_neural_rasterizer_forward.1} parent=0 // pred_check
    _
  $region63: #{cnn_neural_rasterizer_forward.1} parent=0 // pred_check_branch
    %1904 = sbr.rel (0) target = $region65
  $region64: #{cnn_neural_rasterizer_forward.1} parent=0 // pred_region
    _
  $region65: #{cnn_neural_rasterizer_forward.1} parent=0 // pred_fallthru
    _

</llo_original>
